<compile_context>
chip_gen: v6e
topology: v6e:2x2x1
jax: 0.10.0
libtpu: 0.0.40
codegen_flags: <defaults>
</compile_context>

<pallas_src>
import jax
import jax.numpy as jnp
from jax import lax
from jax.experimental import pallas as pl
from jax.experimental.pallas import tpu as pltpu

# --- stand-ins for the `config` module the PyTorch code reads ----------------
LSTM_HIDDEN_SIZE = 128
LSTM_NUM_LAYERS = 1   # TODO(synk): config.LSTM_NUM_LAYERS > 1 would need stacked per-layer weights
FC_DIM = 256


def actor_kernel(state_ref,                       # [T*B, D]   f32 (time-major, flattened)
                 fc1_w_ref, fc1_b_ref,            # [D, 256] bf16, [1, 256] f32
                 w_ih_ref,                        # [256, 4H] bf16 (gate order i|f|o|g)
                 w_hh_ref, bias_ref,              # [H, 4H] bf16,  [1, 4H] f32 (b_ih+b_hh)
                 h0_ref, c0_ref,                  # [1, B, H] f32 each
                 fc2_w_ref, fc2_b_ref,            # [H, 256] bf16, [1, 256] f32
                 pi_w_ref, pi_b_ref,              # [256, A_pad] bf16, [1, A_pad] f32
                 pi_ref, h_out_ref, c_out_ref,    # [B, A_pad], [1, B, H], [1, B, H] f32
                 gates_scr):                      # VMEM scratch [T, B, 4H] f32
    H = h0_ref.shape[-1]
    B = h0_ref.shape[1]
    T = gates_scr.shape[0]

    # ---- hoisted, batched part: one big MXU pass over all T*B rows ----------
    # x = relu(state @ fc1_w + fc1_b)                          [T*B, 256]
    x = jnp.maximum(
        jnp.dot(state_ref[...].astype(jnp.bfloat16), fc1_w_ref[...],
                preferred_element_type=jnp.float32) + fc1_b_ref[...],
        0.0)
    # pre_gates = x @ w_ih + (b_ih + b_hh)                     [T*B, 4H] -> [T, B, 4H]
    pre = (jnp.dot(x.astype(jnp.bfloat16), w_ih_ref[...],
                   preferred_element_type=jnp.float32) + bias_ref[...])
    gates_scr[...] = pre.reshape(T, B, 4 * H)

    # ---- sequential recurrence: only h @ w_hh + elementwise gates -----------
    def step(t, carry):
        h, c = carry
        gates = gates_scr[t] + jnp.dot(h.astype(jnp.bfloat16), w_hh_ref[...],
                                       preferred_element_type=jnp.float32)
        # permuted gate order: [i | f | o | g]  (128-lane aligned slices)
        ifo = jax.nn.sigmoid(gates[:, :3 * H])
        g_g = jnp.tanh(gates[:, 3 * H:])
        i_g = ifo[:, :H]
        f_g = ifo[:, H:2 * H]
        o_g = ifo[:, 2 * H:]
        c_new = f_g * c + i_g * g_g
        h_new = o_g * jnp.tanh(c_new)
        return h_new, c_new

    h_fin, c_fin = lax.fori_loop(0, T, step, (h0_ref[0], c0_ref[0]),
                                 unroll=T <= 16)

    # ---- head: fc2 + relu, pi + tanh on the last hidden state ---------------
    y = jnp.maximum(
        jnp.dot(h_fin.astype(jnp.bfloat16), fc2_w_ref[...],
                preferred_element_type=jnp.float32) + fc2_b_ref[...],
        0.0)
    pi_ref[...] = jnp.tanh(
        jnp.dot(y.astype(jnp.bfloat16), pi_w_ref[...],
                preferred_element_type=jnp.float32) + pi_b_ref[...])
    h_out_ref[0] = h_fin
    c_out_ref[0] = c_fin


def _permute_gate_cols(w):
    """Reorder packed gate columns from PyTorch [i|f|g|o] to kernel [i|f|o|g]."""
    H = LSTM_HIDDEN_SIZE
    return jnp.concatenate(
        [w[..., :2 * H], w[..., 3 * H:4 * H], w[..., 2 * H:3 * H]], axis=-1)


def actor_forward(state, params, hidden_in, cell_in):
    """Pallas implementation of ActorNetwork.forward."""
    if state.ndim == 2:                # mirror `x = x.unsqueeze(1)`
        state = state[:, None, :]
    B, T, D = state.shape
    H = LSTM_HIDDEN_SIZE
    A = params["pi_w"].shape[1]
    A_pad = ((A + 127) // 128) * 128   # lane-dense pi output slab
    Bp = ((B + 7) // 8) * 8            # sublane-aligned batch

    # pad batch to a multiple of 8 sublanes (padded rows are sliced off below)
    if Bp != B:
        state = jnp.pad(state, ((0, Bp - B), (0, 0), (0, 0)))
        hidden_in = jnp.pad(hidden_in, ((0, 0), (0, Bp - B), (0, 0)))
        cell_in = jnp.pad(cell_in, ((0, 0), (0, Bp - B), (0, 0)))

    # time-major, flattened: row t*Bp + b corresponds to (t, b)
    state_flat = jnp.transpose(state, (1, 0, 2)).reshape(T * Bp, D)

    # pre-sum LSTM biases and permute packed gate columns to [i|f|o|g]
    bias_sum = _permute_gate_cols(params["b_ih"] + params["b_hh"])
    w_ih = _permute_gate_cols(params["w_ih"]).astype(jnp.bfloat16)
    w_hh = _permute_gate_cols(params["w_hh"]).astype(jnp.bfloat16)

    # pad pi head to 128 lanes (tanh(0) = 0 in padded columns; sliced off below)
    pi_w = params["pi_w"]
    pi_b = params["pi_b"]
    if A_pad != A:
        pi_w = jnp.pad(pi_w, ((0, 0), (0, A_pad - A)))
        pi_b = jnp.pad(pi_b, ((0, 0), (0, A_pad - A)))

    inputs = [
        state_flat,
        params["fc1_w"].astype(jnp.bfloat16), params["fc1_b"],
        w_ih,
        w_hh, bias_sum,
        hidden_in, cell_in,
        params["fc2_w"].astype(jnp.bfloat16), params["fc2_b"],
        pi_w.astype(jnp.bfloat16), pi_b,
    ]

    vmem = pl.BlockSpec(memory_space=pltpu.MemorySpace.VMEM)
    pi_pad, h_out, c_out = pl.pallas_call(
        actor_kernel,
        out_shape=(
            jax.ShapeDtypeStruct((Bp, A_pad), jnp.float32),
            jax.ShapeDtypeStruct((LSTM_NUM_LAYERS, Bp, H), jnp.float32),
            jax.ShapeDtypeStruct((LSTM_NUM_LAYERS, Bp, H), jnp.float32),
        ),
        in_specs=[vmem for _ in inputs],
        out_specs=(vmem, vmem, vmem),
        scratch_shapes=[
            pltpu.VMEM((T, Bp, 4 * H), jnp.float32),   # hoisted pre-gates
        ],
        compiler_params=pltpu.CompilerParams(
            vmem_limit_bytes=32 * 1024 * 1024),
    )(*inputs)

    return pi_pad[:B, :A], h_out[:, :B], c_out[:, :B]


# --------------------------- parameter init ----------------------------------
def init_params(key, input_dims, n_actions):
    """Deterministic synthetic params (shapes match nn.Linear / nn.LSTM)."""
    H = LSTM_HIDDEN_SIZE

    def uni(k, shape, fan_in):
        bound = 1.0 / jnp.sqrt(jnp.float32(fan_in))
        return jax.random.uniform(k, shape, jnp.float32, -bound, bound)

    ks = jax.random.split(key, 12)
    return {
        # stored as [in, out] (transposed vs torch's [out, in])
        "fc1_w": uni(ks[0], (input_dims, FC_DIM), input_dims),
        "fc1_b": uni(ks[1], (1, FC_DIM), input_dims),
        "w_ih":  uni(ks[2], (FC_DIM, 4 * H), H),
        "b_ih":  uni(ks[3], (1, 4 * H), H),
        "w_hh":  uni(ks[4], (H, 4 * H), H),
        "b_hh":  uni(ks[5], (1, 4 * H), H),
        "fc2_w": uni(ks[6], (H, FC_DIM), H),
        "fc2_b": uni(ks[7], (1, FC_DIM), H),
        "pi_w":  uni(ks[8], (FC_DIM, n_actions), FC_DIM),
        "pi_b":  uni(ks[9], (1, n_actions), FC_DIM),
    }


# --------------------------- pure-JAX reference -------------------------------
def reference_forward(state, params, hidden_in, cell_in):
    if state.ndim == 2:
        state = state[:, None, :]
    H = LSTM_HIDDEN_SIZE
    x = jax.nn.relu(state @ params["fc1_w"] + params["fc1_b"])
    h, c = hidden_in[0], cell_in[0]
    for t in range(x.shape[1]):
        gates = (x[:, t] @ params["w_ih"] + params["b_ih"]
                 + h @ params["w_hh"] + params["b_hh"])
        i_g = jax.nn.sigmoid(gates[:, :H])
        f_g = jax.nn.sigmoid(gates[:, H:2 * H])
        g_g = jnp.tanh(gates[:, 2 * H:3 * H])
        o_g = jax.nn.sigmoid(gates[:, 3 * H:])
        c = f_g * c + i_g * g_g
        h = o_g * jnp.tanh(c)
    y = jax.nn.relu(h @ params["fc2_w"] + params["fc2_b"])
    pi = jnp.tanh(y @ params["pi_w"] + params["pi_b"])
    return pi, h[None], c[None]


if __name__ == "__main__":
    B, T, D, A = 8, 8, 32, 8       # batch, seq, input_dims, n_actions
    H = LSTM_HIDDEN_SIZE

    key = jax.random.PRNGKey(0)
    k_par, k_state, k_h, k_c = jax.random.split(key, 4)

    params = init_params(k_par, D, A)
    state = jax.random.normal(k_state, (B, T, D), jnp.float32)
    hidden_in = jax.random.normal(k_h, (LSTM_NUM_LAYERS, B, H), jnp.float32)
    cell_in = jax.random.normal(k_c, (LSTM_NUM_LAYERS, B, H), jnp.float32)

    pi, h_out, c_out = jax.block_until_ready(
        actor_forward(state, params, hidden_in, cell_in))

    # f32 reference; kernel uses bf16 MXU operands, so tolerance is relaxed.
    pi_r, h_r, c_r = reference_forward(state, params, hidden_in, cell_in)
    assert jnp.allclose(pi, pi_r, atol=2e-2), "pi mismatch vs reference"
    assert jnp.allclose(h_out, h_r, atol=2e-2), "hidden_out mismatch vs reference"
    assert jnp.allclose(c_out, c_r, atol=2e-2), "cell_out mismatch vs reference"

    print("KERNEL_OK")
</pallas_src>

<mosaic_0001>
module attributes {stable_mosaic.version = 11 : i64} {
  func.func @actor_kernel(%arg0: memref<64x32xf32, #tpu.memory_space<vmem>>, %arg1: memref<32x256xbf16, #tpu.memory_space<vmem>>, %arg2: memref<1x256xf32, #tpu.memory_space<vmem>>, %arg3: memref<256x512xbf16, #tpu.memory_space<vmem>>, %arg4: memref<128x512xbf16, #tpu.memory_space<vmem>>, %arg5: memref<1x512xf32, #tpu.memory_space<vmem>>, %arg6: memref<1x8x128xf32, #tpu.memory_space<vmem>>, %arg7: memref<1x8x128xf32, #tpu.memory_space<vmem>>, %arg8: memref<128x256xbf16, #tpu.memory_space<vmem>>, %arg9: memref<1x256xf32, #tpu.memory_space<vmem>>, %arg10: memref<256x128xbf16, #tpu.memory_space<vmem>>, %arg11: memref<1x128xf32, #tpu.memory_space<vmem>>, %arg12: memref<8x128xf32, #tpu.memory_space<vmem>>, %arg13: memref<1x8x128xf32, #tpu.memory_space<vmem>>, %arg14: memref<1x8x128xf32, #tpu.memory_space<vmem>>, %arg15: memref<8x8x512xf32, #tpu.memory_space<vmem>>) attributes {dimension_semantics = [], scalar_prefetch = 0 : i64, scratch_operands = 1 : i64, tpu.core_type = #tpu.core_type<tc>} {
    %c0 = arith.constant 0 : index
    %c0_0 = arith.constant 0 : index
    %0 = vector.load %arg0[%c0, %c0_0] : memref<64x32xf32, #tpu.memory_space<vmem>>, vector<64x32xf32>
    %1 = arith.truncf %0 : vector<64x32xf32> to vector<64x32xbf16>
    %c0_1 = arith.constant 0 : index
    %c0_2 = arith.constant 0 : index
    %2 = vector.load %arg1[%c0_1, %c0_2] : memref<32x256xbf16, #tpu.memory_space<vmem>>, vector<32x256xbf16>
    %cst = arith.constant dense<0.000000e+00> : vector<64x256xf32>
    %3 = tpu.matmul %1, %2, %cst {dimension_numbers = #tpu.dot_dimension_numbers<[1], [0], [0], [1], [0, 0, 1, 1], [], []>} : vector<64x32xbf16>, vector<32x256xbf16>, vector<64x256xf32> -> vector<64x256xf32>
    %c0_3 = arith.constant 0 : index
    %c0_4 = arith.constant 0 : index
    %4 = vector.load %arg2[%c0_3, %c0_4] : memref<1x256xf32, #tpu.memory_space<vmem>>, vector<1x256xf32>
    %5 = vector.broadcast %4 : vector<1x256xf32> to vector<64x256xf32>
    %6 = arith.addf %3, %5 : vector<64x256xf32>
    %cst_5 = arith.constant 0.000000e+00 : f32
    %7 = vector.broadcast %cst_5 : f32 to vector<64x256xf32>
    %8 = arith.maximumf %6, %7 : vector<64x256xf32>
    %9 = arith.truncf %8 : vector<64x256xf32> to vector<64x256xbf16>
    %c0_6 = arith.constant 0 : index
    %c0_7 = arith.constant 0 : index
    %10 = vector.load %arg3[%c0_6, %c0_7] : memref<256x512xbf16, #tpu.memory_space<vmem>>, vector<256x512xbf16>
    %cst_8 = arith.constant dense<0.000000e+00> : vector<64x512xf32>
    %11 = tpu.matmul %9, %10, %cst_8 {dimension_numbers = #tpu.dot_dimension_numbers<[1], [0], [0], [1], [0, 0, 1, 1], [], []>} : vector<64x256xbf16>, vector<256x512xbf16>, vector<64x512xf32> -> vector<64x512xf32>
    %c0_9 = arith.constant 0 : index
    %c0_10 = arith.constant 0 : index
    %12 = vector.load %arg5[%c0_9, %c0_10] : memref<1x512xf32, #tpu.memory_space<vmem>>, vector<1x512xf32>
    %13 = vector.broadcast %12 : vector<1x512xf32> to vector<64x512xf32>
    %14 = arith.addf %11, %13 : vector<64x512xf32>
    %15 = vector.shape_cast %14 : vector<64x512xf32> to vector<8x8x512xf32>
    %c0_11 = arith.constant 0 : index
    %c0_12 = arith.constant 0 : index
    %c0_13 = arith.constant 0 : index
    %16 = vector.load %arg15[%c0_11, %c0_12, %c0_13] : memref<8x8x512xf32, #tpu.memory_space<vmem>>, vector<8x8x512xf32>
    tpu.vector_store %arg15[%c0_11, %c0_12, %c0_13], %15 {strides = array<i32>} : memref<8x8x512xf32, #tpu.memory_space<vmem>>, vector<8x8x512xf32>,
    %c0_14 = arith.constant 0 : index
    %c0_15 = arith.constant 0 : index
    %c0_16 = arith.constant 0 : index
    %17 = vector.load %arg6[%c0_14, %c0_15, %c0_16] : memref<1x8x128xf32, #tpu.memory_space<vmem>>, vector<1x8x128xf32>
    %18 = vector.shape_cast %17 : vector<1x8x128xf32> to vector<8x128xf32>
    %c0_17 = arith.constant 0 : index
    %c0_18 = arith.constant 0 : index
    %c0_19 = arith.constant 0 : index
    %19 = vector.load %arg7[%c0_17, %c0_18, %c0_19] : memref<1x8x128xf32, #tpu.memory_space<vmem>>, vector<1x8x128xf32>
    %20 = vector.shape_cast %19 : vector<1x8x128xf32> to vector<8x128xf32>
    %c0_i32 = arith.constant 0 : i32
    %21 = arith.index_cast %c0_i32 : i32 to index
    %c0_20 = arith.constant 0 : index
    %c0_21 = arith.constant 0 : index
    %22 = vector.load %arg15[%21, %c0_20, %c0_21] : memref<8x8x512xf32, #tpu.memory_space<vmem>>, vector<1x8x512xf32>
    %23 = vector.shape_cast %22 : vector<1x8x512xf32> to vector<8x512xf32>
    %24 = arith.truncf %18 : vector<8x128xf32> to vector<8x128xbf16>
    %c0_22 = arith.constant 0 : index
    %c0_23 = arith.constant 0 : index
    %25 = vector.load %arg4[%c0_22, %c0_23] : memref<128x512xbf16, #tpu.memory_space<vmem>>, vector<128x512xbf16>
    %cst_24 = arith.constant dense<0.000000e+00> : vector<8x512xf32>
    %26 = tpu.matmul %24, %25, %cst_24 {dimension_numbers = #tpu.dot_dimension_numbers<[1], [0], [0], [1], [0, 0, 1, 1], [], []>} : vector<8x128xbf16>, vector<128x512xbf16>, vector<8x512xf32> -> vector<8x512xf32>
    %27 = arith.addf %23, %26 : vector<8x512xf32>
    %28 = vector.extract_strided_slice %27 {offsets = [0, 0], sizes = [8, 384], strides = [1, 1]} : vector<8x512xf32> to vector<8x384xf32>
    %29 = arith.negf %28 : vector<8x384xf32>
    %30 = math.exp %29 : vector<8x384xf32>
    %cst_25 = arith.constant 1.000000e+00 : f32
    %31 = vector.broadcast %cst_25 : f32 to vector<8x384xf32>
    %32 = arith.addf %31, %30 : vector<8x384xf32>
    %33 = arith.divf %31, %32 : vector<8x384xf32>
    %34 = vector.extract_strided_slice %27 {offsets = [0, 384], sizes = [8, 128], strides = [1, 1]} : vector<8x512xf32> to vector<8x128xf32>
    %35 = math.tanh %34 : vector<8x128xf32>
    %36 = vector.extract_strided_slice %33 {offsets = [0, 0], sizes = [8, 128], strides = [1, 1]} : vector<8x384xf32> to vector<8x128xf32>
    %37 = vector.extract_strided_slice %33 {offsets = [0, 128], sizes = [8, 128], strides = [1, 1]} : vector<8x384xf32> to vector<8x128xf32>
    %38 = vector.extract_strided_slice %33 {offsets = [0, 256], sizes = [8, 128], strides = [1, 1]} : vector<8x384xf32> to vector<8x128xf32>
    %39 = arith.mulf %37, %20 : vector<8x128xf32>
    %40 = arith.mulf %36, %35 : vector<8x128xf32>
    %41 = arith.addf %39, %40 : vector<8x128xf32>
    %42 = math.tanh %41 : vector<8x128xf32>
    %43 = arith.mulf %38, %42 : vector<8x128xf32>
    %c1_i32 = arith.constant 1 : i32
    %44 = arith.index_cast %c1_i32 : i32 to index
    %c0_26 = arith.constant 0 : index
    %c0_27 = arith.constant 0 : index
    %45 = vector.load %arg15[%44, %c0_26, %c0_27] : memref<8x8x512xf32, #tpu.memory_space<vmem>>, vector<1x8x512xf32>
    %46 = vector.shape_cast %45 : vector<1x8x512xf32> to vector<8x512xf32>
    %47 = arith.truncf %43 : vector<8x128xf32> to vector<8x128xbf16>
    %c0_28 = arith.constant 0 : index
    %c0_29 = arith.constant 0 : index
    %48 = vector.load %arg4[%c0_28, %c0_29] : memref<128x512xbf16, #tpu.memory_space<vmem>>, vector<128x512xbf16>
    %cst_30 = arith.constant dense<0.000000e+00> : vector<8x512xf32>
    %49 = tpu.matmul %47, %48, %cst_30 {dimension_numbers = #tpu.dot_dimension_numbers<[1], [0], [0], [1], [0, 0, 1, 1], [], []>} : vector<8x128xbf16>, vector<128x512xbf16>, vector<8x512xf32> -> vector<8x512xf32>
    %50 = arith.addf %46, %49 : vector<8x512xf32>
    %51 = vector.extract_strided_slice %50 {offsets = [0, 0], sizes = [8, 384], strides = [1, 1]} : vector<8x512xf32> to vector<8x384xf32>
    %52 = arith.negf %51 : vector<8x384xf32>
    %53 = math.exp %52 : vector<8x384xf32>
    %cst_31 = arith.constant 1.000000e+00 : f32
    %54 = vector.broadcast %cst_31 : f32 to vector<8x384xf32>
    %55 = arith.addf %54, %53 : vector<8x384xf32>
    %56 = arith.divf %54, %55 : vector<8x384xf32>
    %57 = vector.extract_strided_slice %50 {offsets = [0, 384], sizes = [8, 128], strides = [1, 1]} : vector<8x512xf32> to vector<8x128xf32>
    %58 = math.tanh %57 : vector<8x128xf32>
    %59 = vector.extract_strided_slice %56 {offsets = [0, 0], sizes = [8, 128], strides = [1, 1]} : vector<8x384xf32> to vector<8x128xf32>
    %60 = vector.extract_strided_slice %56 {offsets = [0, 128], sizes = [8, 128], strides = [1, 1]} : vector<8x384xf32> to vector<8x128xf32>
    %61 = vector.extract_strided_slice %56 {offsets = [0, 256], sizes = [8, 128], strides = [1, 1]} : vector<8x384xf32> to vector<8x128xf32>
    %62 = arith.mulf %60, %41 : vector<8x128xf32>
    %63 = arith.mulf %59, %58 : vector<8x128xf32>
    %64 = arith.addf %62, %63 : vector<8x128xf32>
    %65 = math.tanh %64 : vector<8x128xf32>
    %66 = arith.mulf %61, %65 : vector<8x128xf32>
    %c2_i32 = arith.constant 2 : i32
    %67 = arith.index_cast %c2_i32 : i32 to index
    %c0_32 = arith.constant 0 : index
    %c0_33 = arith.constant 0 : index
    %68 = vector.load %arg15[%67, %c0_32, %c0_33] : memref<8x8x512xf32, #tpu.memory_space<vmem>>, vector<1x8x512xf32>
    %69 = vector.shape_cast %68 : vector<1x8x512xf32> to vector<8x512xf32>
    %70 = arith.truncf %66 : vector<8x128xf32> to vector<8x128xbf16>
    %c0_34 = arith.constant 0 : index
    %c0_35 = arith.constant 0 : index
    %71 = vector.load %arg4[%c0_34, %c0_35] : memref<128x512xbf16, #tpu.memory_space<vmem>>, vector<128x512xbf16>
    %cst_36 = arith.constant dense<0.000000e+00> : vector<8x512xf32>
    %72 = tpu.matmul %70, %71, %cst_36 {dimension_numbers = #tpu.dot_dimension_numbers<[1], [0], [0], [1], [0, 0, 1, 1], [], []>} : vector<8x128xbf16>, vector<128x512xbf16>, vector<8x512xf32> -> vector<8x512xf32>
    %73 = arith.addf %69, %72 : vector<8x512xf32>
    %74 = vector.extract_strided_slice %73 {offsets = [0, 0], sizes = [8, 384], strides = [1, 1]} : vector<8x512xf32> to vector<8x384xf32>
    %75 = arith.negf %74 : vector<8x384xf32>
    %76 = math.exp %75 : vector<8x384xf32>
    %cst_37 = arith.constant 1.000000e+00 : f32
    %77 = vector.broadcast %cst_37 : f32 to vector<8x384xf32>
    %78 = arith.addf %77, %76 : vector<8x384xf32>
    %79 = arith.divf %77, %78 : vector<8x384xf32>
    %80 = vector.extract_strided_slice %73 {offsets = [0, 384], sizes = [8, 128], strides = [1, 1]} : vector<8x512xf32> to vector<8x128xf32>
    %81 = math.tanh %80 : vector<8x128xf32>
    %82 = vector.extract_strided_slice %79 {offsets = [0, 0], sizes = [8, 128], strides = [1, 1]} : vector<8x384xf32> to vector<8x128xf32>
    %83 = vector.extract_strided_slice %79 {offsets = [0, 128], sizes = [8, 128], strides = [1, 1]} : vector<8x384xf32> to vector<8x128xf32>
    %84 = vector.extract_strided_slice %79 {offsets = [0, 256], sizes = [8, 128], strides = [1, 1]} : vector<8x384xf32> to vector<8x128xf32>
    %85 = arith.mulf %83, %64 : vector<8x128xf32>
    %86 = arith.mulf %82, %81 : vector<8x128xf32>
    %87 = arith.addf %85, %86 : vector<8x128xf32>
    %88 = math.tanh %87 : vector<8x128xf32>
    %89 = arith.mulf %84, %88 : vector<8x128xf32>
    %c3_i32 = arith.constant 3 : i32
    %90 = arith.index_cast %c3_i32 : i32 to index
    %c0_38 = arith.constant 0 : index
    %c0_39 = arith.constant 0 : index
    %91 = vector.load %arg15[%90, %c0_38, %c0_39] : memref<8x8x512xf32, #tpu.memory_space<vmem>>, vector<1x8x512xf32>
    %92 = vector.shape_cast %91 : vector<1x8x512xf32> to vector<8x512xf32>
    %93 = arith.truncf %89 : vector<8x128xf32> to vector<8x128xbf16>
    %c0_40 = arith.constant 0 : index
    %c0_41 = arith.constant 0 : index
    %94 = vector.load %arg4[%c0_40, %c0_41] : memref<128x512xbf16, #tpu.memory_space<vmem>>, vector<128x512xbf16>
    %cst_42 = arith.constant dense<0.000000e+00> : vector<8x512xf32>
    %95 = tpu.matmul %93, %94, %cst_42 {dimension_numbers = #tpu.dot_dimension_numbers<[1], [0], [0], [1], [0, 0, 1, 1], [], []>} : vector<8x128xbf16>, vector<128x512xbf16>, vector<8x512xf32> -> vector<8x512xf32>
    %96 = arith.addf %92, %95 : vector<8x512xf32>
    %97 = vector.extract_strided_slice %96 {offsets = [0, 0], sizes = [8, 384], strides = [1, 1]} : vector<8x512xf32> to vector<8x384xf32>
    %98 = arith.negf %97 : vector<8x384xf32>
    %99 = math.exp %98 : vector<8x384xf32>
    %cst_43 = arith.constant 1.000000e+00 : f32
    %100 = vector.broadcast %cst_43 : f32 to vector<8x384xf32>
    %101 = arith.addf %100, %99 : vector<8x384xf32>
    %102 = arith.divf %100, %101 : vector<8x384xf32>
    %103 = vector.extract_strided_slice %96 {offsets = [0, 384], sizes = [8, 128], strides = [1, 1]} : vector<8x512xf32> to vector<8x128xf32>
    %104 = math.tanh %103 : vector<8x128xf32>
    %105 = vector.extract_strided_slice %102 {offsets = [0, 0], sizes = [8, 128], strides = [1, 1]} : vector<8x384xf32> to vector<8x128xf32>
    %106 = vector.extract_strided_slice %102 {offsets = [0, 128], sizes = [8, 128], strides = [1, 1]} : vector<8x384xf32> to vector<8x128xf32>
    %107 = vector.extract_strided_slice %102 {offsets = [0, 256], sizes = [8, 128], strides = [1, 1]} : vector<8x384xf32> to vector<8x128xf32>
    %108 = arith.mulf %106, %87 : vector<8x128xf32>
    %109 = arith.mulf %105, %104 : vector<8x128xf32>
    %110 = arith.addf %108, %109 : vector<8x128xf32>
    %111 = math.tanh %110 : vector<8x128xf32>
    %112 = arith.mulf %107, %111 : vector<8x128xf32>
    %c4_i32 = arith.constant 4 : i32
    %113 = arith.index_cast %c4_i32 : i32 to index
    %c0_44 = arith.constant 0 : index
    %c0_45 = arith.constant 0 : index
    %114 = vector.load %arg15[%113, %c0_44, %c0_45] : memref<8x8x512xf32, #tpu.memory_space<vmem>>, vector<1x8x512xf32>
    %115 = vector.shape_cast %114 : vector<1x8x512xf32> to vector<8x512xf32>
    %116 = arith.truncf %112 : vector<8x128xf32> to vector<8x128xbf16>
    %c0_46 = arith.constant 0 : index
    %c0_47 = arith.constant 0 : index
    %117 = vector.load %arg4[%c0_46, %c0_47] : memref<128x512xbf16, #tpu.memory_space<vmem>>, vector<128x512xbf16>
    %cst_48 = arith.constant dense<0.000000e+00> : vector<8x512xf32>
    %118 = tpu.matmul %116, %117, %cst_48 {dimension_numbers = #tpu.dot_dimension_numbers<[1], [0], [0], [1], [0, 0, 1, 1], [], []>} : vector<8x128xbf16>, vector<128x512xbf16>, vector<8x512xf32> -> vector<8x512xf32>
    %119 = arith.addf %115, %118 : vector<8x512xf32>
    %120 = vector.extract_strided_slice %119 {offsets = [0, 0], sizes = [8, 384], strides = [1, 1]} : vector<8x512xf32> to vector<8x384xf32>
    %121 = arith.negf %120 : vector<8x384xf32>
    %122 = math.exp %121 : vector<8x384xf32>
    %cst_49 = arith.constant 1.000000e+00 : f32
    %123 = vector.broadcast %cst_49 : f32 to vector<8x384xf32>
    %124 = arith.addf %123, %122 : vector<8x384xf32>
    %125 = arith.divf %123, %124 : vector<8x384xf32>
    %126 = vector.extract_strided_slice %119 {offsets = [0, 384], sizes = [8, 128], strides = [1, 1]} : vector<8x512xf32> to vector<8x128xf32>
    %127 = math.tanh %126 : vector<8x128xf32>
    %128 = vector.extract_strided_slice %125 {offsets = [0, 0], sizes = [8, 128], strides = [1, 1]} : vector<8x384xf32> to vector<8x128xf32>
    %129 = vector.extract_strided_slice %125 {offsets = [0, 128], sizes = [8, 128], strides = [1, 1]} : vector<8x384xf32> to vector<8x128xf32>
    %130 = vector.extract_strided_slice %125 {offsets = [0, 256], sizes = [8, 128], strides = [1, 1]} : vector<8x384xf32> to vector<8x128xf32>
    %131 = arith.mulf %129, %110 : vector<8x128xf32>
    %132 = arith.mulf %128, %127 : vector<8x128xf32>
    %133 = arith.addf %131, %132 : vector<8x128xf32>
    %134 = math.tanh %133 : vector<8x128xf32>
    %135 = arith.mulf %130, %134 : vector<8x128xf32>
    %c5_i32 = arith.constant 5 : i32
    %136 = arith.index_cast %c5_i32 : i32 to index
    %c0_50 = arith.constant 0 : index
    %c0_51 = arith.constant 0 : index
    %137 = vector.load %arg15[%136, %c0_50, %c0_51] : memref<8x8x512xf32, #tpu.memory_space<vmem>>, vector<1x8x512xf32>
    %138 = vector.shape_cast %137 : vector<1x8x512xf32> to vector<8x512xf32>
    %139 = arith.truncf %135 : vector<8x128xf32> to vector<8x128xbf16>
    %c0_52 = arith.constant 0 : index
    %c0_53 = arith.constant 0 : index
    %140 = vector.load %arg4[%c0_52, %c0_53] : memref<128x512xbf16, #tpu.memory_space<vmem>>, vector<128x512xbf16>
    %cst_54 = arith.constant dense<0.000000e+00> : vector<8x512xf32>
    %141 = tpu.matmul %139, %140, %cst_54 {dimension_numbers = #tpu.dot_dimension_numbers<[1], [0], [0], [1], [0, 0, 1, 1], [], []>} : vector<8x128xbf16>, vector<128x512xbf16>, vector<8x512xf32> -> vector<8x512xf32>
    %142 = arith.addf %138, %141 : vector<8x512xf32>
    %143 = vector.extract_strided_slice %142 {offsets = [0, 0], sizes = [8, 384], strides = [1, 1]} : vector<8x512xf32> to vector<8x384xf32>
    %144 = arith.negf %143 : vector<8x384xf32>
    %145 = math.exp %144 : vector<8x384xf32>
    %cst_55 = arith.constant 1.000000e+00 : f32
    %146 = vector.broadcast %cst_55 : f32 to vector<8x384xf32>
    %147 = arith.addf %146, %145 : vector<8x384xf32>
    %148 = arith.divf %146, %147 : vector<8x384xf32>
    %149 = vector.extract_strided_slice %142 {offsets = [0, 384], sizes = [8, 128], strides = [1, 1]} : vector<8x512xf32> to vector<8x128xf32>
    %150 = math.tanh %149 : vector<8x128xf32>
    %151 = vector.extract_strided_slice %148 {offsets = [0, 0], sizes = [8, 128], strides = [1, 1]} : vector<8x384xf32> to vector<8x128xf32>
    %152 = vector.extract_strided_slice %148 {offsets = [0, 128], sizes = [8, 128], strides = [1, 1]} : vector<8x384xf32> to vector<8x128xf32>
    %153 = vector.extract_strided_slice %148 {offsets = [0, 256], sizes = [8, 128], strides = [1, 1]} : vector<8x384xf32> to vector<8x128xf32>
    %154 = arith.mulf %152, %133 : vector<8x128xf32>
    %155 = arith.mulf %151, %150 : vector<8x128xf32>
    %156 = arith.addf %154, %155 : vector<8x128xf32>
    %157 = math.tanh %156 : vector<8x128xf32>
    %158 = arith.mulf %153, %157 : vector<8x128xf32>
    %c6_i32 = arith.constant 6 : i32
    %159 = arith.index_cast %c6_i32 : i32 to index
    %c0_56 = arith.constant 0 : index
    %c0_57 = arith.constant 0 : index
    %160 = vector.load %arg15[%159, %c0_56, %c0_57] : memref<8x8x512xf32, #tpu.memory_space<vmem>>, vector<1x8x512xf32>
    %161 = vector.shape_cast %160 : vector<1x8x512xf32> to vector<8x512xf32>
    %162 = arith.truncf %158 : vector<8x128xf32> to vector<8x128xbf16>
    %c0_58 = arith.constant 0 : index
    %c0_59 = arith.constant 0 : index
    %163 = vector.load %arg4[%c0_58, %c0_59] : memref<128x512xbf16, #tpu.memory_space<vmem>>, vector<128x512xbf16>
    %cst_60 = arith.constant dense<0.000000e+00> : vector<8x512xf32>
    %164 = tpu.matmul %162, %163, %cst_60 {dimension_numbers = #tpu.dot_dimension_numbers<[1], [0], [0], [1], [0, 0, 1, 1], [], []>} : vector<8x128xbf16>, vector<128x512xbf16>, vector<8x512xf32> -> vector<8x512xf32>
    %165 = arith.addf %161, %164 : vector<8x512xf32>
    %166 = vector.extract_strided_slice %165 {offsets = [0, 0], sizes = [8, 384], strides = [1, 1]} : vector<8x512xf32> to vector<8x384xf32>
    %167 = arith.negf %166 : vector<8x384xf32>
    %168 = math.exp %167 : vector<8x384xf32>
    %cst_61 = arith.constant 1.000000e+00 : f32
    %169 = vector.broadcast %cst_61 : f32 to vector<8x384xf32>
    %170 = arith.addf %169, %168 : vector<8x384xf32>
    %171 = arith.divf %169, %170 : vector<8x384xf32>
    %172 = vector.extract_strided_slice %165 {offsets = [0, 384], sizes = [8, 128], strides = [1, 1]} : vector<8x512xf32> to vector<8x128xf32>
    %173 = math.tanh %172 : vector<8x128xf32>
    %174 = vector.extract_strided_slice %171 {offsets = [0, 0], sizes = [8, 128], strides = [1, 1]} : vector<8x384xf32> to vector<8x128xf32>
    %175 = vector.extract_strided_slice %171 {offsets = [0, 128], sizes = [8, 128], strides = [1, 1]} : vector<8x384xf32> to vector<8x128xf32>
    %176 = vector.extract_strided_slice %171 {offsets = [0, 256], sizes = [8, 128], strides = [1, 1]} : vector<8x384xf32> to vector<8x128xf32>
    %177 = arith.mulf %175, %156 : vector<8x128xf32>
    %178 = arith.mulf %174, %173 : vector<8x128xf32>
    %179 = arith.addf %177, %178 : vector<8x128xf32>
    %180 = math.tanh %179 : vector<8x128xf32>
    %181 = arith.mulf %176, %180 : vector<8x128xf32>
    %c7_i32 = arith.constant 7 : i32
    %182 = arith.index_cast %c7_i32 : i32 to index
    %c0_62 = arith.constant 0 : index
    %c0_63 = arith.constant 0 : index
    %183 = vector.load %arg15[%182, %c0_62, %c0_63] : memref<8x8x512xf32, #tpu.memory_space<vmem>>, vector<1x8x512xf32>
    %184 = vector.shape_cast %183 : vector<1x8x512xf32> to vector<8x512xf32>
    %185 = arith.truncf %181 : vector<8x128xf32> to vector<8x128xbf16>
    %c0_64 = arith.constant 0 : index
    %c0_65 = arith.constant 0 : index
    %186 = vector.load %arg4[%c0_64, %c0_65] : memref<128x512xbf16, #tpu.memory_space<vmem>>, vector<128x512xbf16>
    %cst_66 = arith.constant dense<0.000000e+00> : vector<8x512xf32>
    %187 = tpu.matmul %185, %186, %cst_66 {dimension_numbers = #tpu.dot_dimension_numbers<[1], [0], [0], [1], [0, 0, 1, 1], [], []>} : vector<8x128xbf16>, vector<128x512xbf16>, vector<8x512xf32> -> vector<8x512xf32>
    %188 = arith.addf %184, %187 : vector<8x512xf32>
    %189 = vector.extract_strided_slice %188 {offsets = [0, 0], sizes = [8, 384], strides = [1, 1]} : vector<8x512xf32> to vector<8x384xf32>
    %190 = arith.negf %189 : vector<8x384xf32>
    %191 = math.exp %190 : vector<8x384xf32>
    %cst_67 = arith.constant 1.000000e+00 : f32
    %192 = vector.broadcast %cst_67 : f32 to vector<8x384xf32>
    %193 = arith.addf %192, %191 : vector<8x384xf32>
    %194 = arith.divf %192, %193 : vector<8x384xf32>
    %195 = vector.extract_strided_slice %188 {offsets = [0, 384], sizes = [8, 128], strides = [1, 1]} : vector<8x512xf32> to vector<8x128xf32>
    %196 = math.tanh %195 : vector<8x128xf32>
    %197 = vector.extract_strided_slice %194 {offsets = [0, 0], sizes = [8, 128], strides = [1, 1]} : vector<8x384xf32> to vector<8x128xf32>
    %198 = vector.extract_strided_slice %194 {offsets = [0, 128], sizes = [8, 128], strides = [1, 1]} : vector<8x384xf32> to vector<8x128xf32>
    %199 = vector.extract_strided_slice %194 {offsets = [0, 256], sizes = [8, 128], strides = [1, 1]} : vector<8x384xf32> to vector<8x128xf32>
    %200 = arith.mulf %198, %179 : vector<8x128xf32>
    %201 = arith.mulf %197, %196 : vector<8x128xf32>
    %202 = arith.addf %200, %201 : vector<8x128xf32>
    %203 = math.tanh %202 : vector<8x128xf32>
    %204 = arith.mulf %199, %203 : vector<8x128xf32>
    %c8_i32 = arith.constant 8 : i32
    %205 = arith.truncf %204 : vector<8x128xf32> to vector<8x128xbf16>
    %c0_68 = arith.constant 0 : index
    %c0_69 = arith.constant 0 : index
    %206 = vector.load %arg8[%c0_68, %c0_69] : memref<128x256xbf16, #tpu.memory_space<vmem>>, vector<128x256xbf16>
    %cst_70 = arith.constant dense<0.000000e+00> : vector<8x256xf32>
    %207 = tpu.matmul %205, %206, %cst_70 {dimension_numbers = #tpu.dot_dimension_numbers<[1], [0], [0], [1], [0, 0, 1, 1], [], []>} : vector<8x128xbf16>, vector<128x256xbf16>, vector<8x256xf32> -> vector<8x256xf32>
    %c0_71 = arith.constant 0 : index
    %c0_72 = arith.constant 0 : index
    %208 = vector.load %arg9[%c0_71, %c0_72] : memref<1x256xf32, #tpu.memory_space<vmem>>, vector<1x256xf32>
    %209 = vector.broadcast %208 : vector<1x256xf32> to vector<8x256xf32>
    %210 = arith.addf %207, %209 : vector<8x256xf32>
    %cst_73 = arith.constant 0.000000e+00 : f32
    %211 = vector.broadcast %cst_73 : f32 to vector<8x256xf32>
    %212 = arith.maximumf %210, %211 : vector<8x256xf32>
    %213 = arith.truncf %212 : vector<8x256xf32> to vector<8x256xbf16>
    %c0_74 = arith.constant 0 : index
    %c0_75 = arith.constant 0 : index
    %214 = vector.load %arg10[%c0_74, %c0_75] : memref<256x128xbf16, #tpu.memory_space<vmem>>, vector<256x128xbf16>
    %cst_76 = arith.constant dense<0.000000e+00> : vector<8x128xf32>
    %215 = tpu.matmul %213, %214, %cst_76 {dimension_numbers = #tpu.dot_dimension_numbers<[1], [0], [0], [1], [0, 0, 1, 1], [], []>} : vector<8x256xbf16>, vector<256x128xbf16>, vector<8x128xf32> -> vector<8x128xf32>
    %c0_77 = arith.constant 0 : index
    %c0_78 = arith.constant 0 : index
    %216 = vector.load %arg11[%c0_77, %c0_78] : memref<1x128xf32, #tpu.memory_space<vmem>>, vector<1x128xf32>
    %217 = vector.broadcast %216 : vector<1x128xf32> to vector<8x128xf32>
    %218 = arith.addf %215, %217 : vector<8x128xf32>
    %219 = math.tanh %218 : vector<8x128xf32>
    %c0_79 = arith.constant 0 : index
    %c0_80 = arith.constant 0 : index
    %220 = vector.load %arg12[%c0_79, %c0_80] : memref<8x128xf32, #tpu.memory_space<vmem>>, vector<8x128xf32>
    tpu.vector_store %arg12[%c0_79, %c0_80], %219 {strides = array<i32>} : memref<8x128xf32, #tpu.memory_space<vmem>>, vector<8x128xf32>,
    %c0_81 = arith.constant 0 : index
    %c0_82 = arith.constant 0 : index
    %c0_83 = arith.constant 0 : index
    %221 = vector.load %arg13[%c0_81, %c0_82, %c0_83] : memref<1x8x128xf32, #tpu.memory_space<vmem>>, vector<1x8x128xf32>
    %222 = vector.shape_cast %221 : vector<1x8x128xf32> to vector<8x128xf32>
    %223 = vector.shape_cast %204 : vector<8x128xf32> to vector<1x8x128xf32>
    tpu.vector_store %arg13[%c0_81, %c0_82, %c0_83], %223 {strides = array<i32>} : memref<1x8x128xf32, #tpu.memory_space<vmem>>, vector<1x8x128xf32>,
    %c0_84 = arith.constant 0 : index
    %c0_85 = arith.constant 0 : index
    %c0_86 = arith.constant 0 : index
    %224 = vector.load %arg14[%c0_84, %c0_85, %c0_86] : memref<1x8x128xf32, #tpu.memory_space<vmem>>, vector<1x8x128xf32>
    %225 = vector.shape_cast %224 : vector<1x8x128xf32> to vector<8x128xf32>
    %226 = vector.shape_cast %202 : vector<8x128xf32> to vector<1x8x128xf32>
    tpu.vector_store %arg14[%c0_84, %c0_85, %c0_86], %226 {strides = array<i32>} : memref<1x8x128xf32, #tpu.memory_space<vmem>>, vector<1x8x128xf32>,
    return
  }
}

</mosaic_0001>

<llo_original>
// kernel: tpu_custom_call.1
$region0: #{tpu_custom_call.1}
  #allocation0 [shape = 'u32[]', space=smem, size = 0x4, offset = 0x4, fixed_abs, tag = 'smem constant byte address 0x4 - core index']
  #allocation1 [shape = 'u32[144,128]{1,0:T(1,128)}', space=vmem, size = 0x12000, scoped, tag = 'internal scratch']
  #allocation2 [shape = 'f32[8,8,512]{2,1,0:T(8,128)}', space=vmem, size = 0x20000, scoped, tag = 'scratch operand']
  %s0 = inlined_call_operand.vmem [shape: f32[64,32], index: 0, kind: input, shape index: {}]
  %s1 = inlined_call_operand.vmem [shape: bf16[32,256], index: 1, kind: input, shape index: {}]
  %s2 = inlined_call_operand.vmem [shape: f32[1,256], index: 2, kind: input, shape index: {}]
  %s3 = inlined_call_operand.hbm [shape: bf16[256,512], index: 3, kind: input, shape index: {}]
  %s4 = inlined_call_operand.hbm [shape: bf16[128,512], index: 4, kind: input, shape index: {}]
  %s5 = inlined_call_operand.vmem [shape: f32[1,512], index: 5, kind: input, shape index: {}]
  %s6 = inlined_call_operand.vmem [shape: f32[1,8,128], index: 6, kind: input, shape index: {}]
  %s7 = inlined_call_operand.vmem [shape: f32[1,8,128], index: 7, kind: input, shape index: {}]
  %s8 = inlined_call_operand.hbm [shape: bf16[128,256], index: 8, kind: input, shape index: {}]
  %s9 = inlined_call_operand.vmem [shape: f32[1,256], index: 9, kind: input, shape index: {}]
  %s10 = inlined_call_operand.hbm [shape: bf16[256,128], index: 10, kind: input, shape index: {}]
  %s11 = inlined_call_operand.vmem [shape: f32[1,128], index: 11, kind: input, shape index: {}]
  %s12 = inlined_call_operand.hbm [shape: f32[8,128], index: 12, kind: output, shape index: {0}]
  %s13 = inlined_call_operand.hbm [shape: f32[1,8,128], index: 13, kind: output, shape index: {1}]
  %s14 = inlined_call_operand.hbm [shape: f32[1,8,128], index: 14, kind: output, shape index: {2}]
  %15 = xla_tuple %s12, %s13, %s14
  %s16 = sld [smem:[#allocation0]]
  $region90: #{tpu_custom_call.1} parent=0
    _
  %s18 = ssub.s32 1, %s16
  %s19 = scalar_select 0, %s18, %s16
  $region1: #{tpu_custom_call.1} parent=0
    #allocation3 [shape = 'u8[262144]{0}', space=vmem, size = 0x40000, scoped, tag = 'input window, operand 3, single buffered']
    #allocation4 [shape = 's32[1]{0}', space=sflag, size = 0x4, scoped, tag = 'scoped memory for tpu_custom_call.1']
    #allocation5 [shape = 's32[1]{0}', space=sflag, size = 0x4, scoped, tag = 'scoped memory for tpu_custom_call.1']
    #allocation6 [shape = 'u8[131072]{0}', space=vmem, size = 0x20000, scoped, tag = 'input window, operand 4, single buffered']
    #allocation7 [shape = 's32[1]{0}', space=sflag, size = 0x4, scoped, tag = 'scoped memory for tpu_custom_call.1']
    #allocation8 [shape = 'u8[65536]{0}', space=vmem, size = 0x10000, scoped, tag = 'input window, operand 8, single buffered']
    #allocation9 [shape = 'u8[65536]{0}', space=vmem, size = 0x10000, scoped, tag = 'input window, operand 10, single buffered']
    #allocation10 [shape = 's32[1]{0}', space=sflag, size = 0x4, scoped, tag = 'scoped memory for tpu_custom_call.1']
    #allocation11 [shape = 'u8[4096]{0}', space=vmem, size = 0x1000, scoped, tag = 'output window, operand 0, single buffered']
    #allocation12 [shape = 'u8[4096]{0}', space=vmem, size = 0x1000, scoped, tag = 'output window, operand 1, single buffered']
    #allocation13 [shape = 's32[1]{0}', space=sflag, size = 0x4, scoped, tag = 'scoped memory for tpu_custom_call.1']
    #allocation14 [shape = 'u8[4096]{0}', space=vmem, size = 0x1000, scoped, tag = 'output window, operand 2, single buffered']
    %20 = vsyncpa [#allocation4], 0
    %21 = vsyncpa [#allocation7], 0
    %22 = vsyncpa [#allocation10], 0
    %23 = vsyncpa [#allocation5], 0
    %24 = vsyncpa [#allocation13], 0
    // Predicated region
    $region2: #{tpu_custom_call.1} parent=1 // pred_check
      _
    $region3: #{tpu_custom_call.1} parent=1 // pred_check_branch
      %26 = sbr.rel (0) target = $region5
    $region4: #{tpu_custom_call.1} parent=1 // pred_region
      _
    $region5: #{tpu_custom_call.1} parent=1 // pred_fallthru
      _
    // Predicated region
    $region6: #{tpu_custom_call.1} parent=1 // pred_check
      _
    $region7: #{tpu_custom_call.1} parent=1 // pred_check_branch
      %28 = sbr.rel (0) target = $region9
    $region8: #{tpu_custom_call.1} parent=1 // pred_region
      _
    $region9: #{tpu_custom_call.1} parent=1 // pred_fallthru
      _
    // Predicated region
    $region10: #{tpu_custom_call.1} parent=1 // pred_check
      _
    $region11: #{tpu_custom_call.1} parent=1 // pred_check_branch
      %30 = sbr.rel (0) target = $region13
    $region12: #{tpu_custom_call.1} parent=1 // pred_region
      _
    $region13: #{tpu_custom_call.1} parent=1 // pred_fallthru
      _
    // Predicated region
    $region14: #{tpu_custom_call.1} parent=1 // pred_check
      _
    $region15: #{tpu_custom_call.1} parent=1 // pred_check_branch
      %32 = sbr.rel (0) target = $region17
    $region16: #{tpu_custom_call.1} parent=1 // pred_region
      %s34 = ssub.s32 8192, 8192
      %35 = vsyncadd [#allocation4], %s34
      %s36 = sshll.u32 [#allocation3], 4
      %s37 = int_to_ptr.vmem [resolvable:$true] %s36
      %42 = dma.hbm_to_vmem [thread:$0]  %s3, 8192, %s37, [#allocation4], 256, 256, 16
    $region17: #{tpu_custom_call.1} parent=1 // pred_fallthru
      _
    // Predicated region
    $region18: #{tpu_custom_call.1} parent=1 // pred_check
      _
    $region19: #{tpu_custom_call.1} parent=1 // pred_check_branch
      %44 = sbr.rel (0) target = $region21
    $region20: #{tpu_custom_call.1} parent=1 // pred_region
      %s46 = ssub.s32 4096, 4096
      %47 = vsyncadd [#allocation7], %s46
      %s48 = sshll.u32 [#allocation6], 4
      %s49 = int_to_ptr.vmem [resolvable:$true] %s48
      %54 = dma.hbm_to_vmem [thread:$0]  %s4, 4096, %s49, [#allocation7], 256, 256, 16
    $region21: #{tpu_custom_call.1} parent=1 // pred_fallthru
      _
    // Predicated region
    $region22: #{tpu_custom_call.1} parent=1 // pred_check
      _
    $region23: #{tpu_custom_call.1} parent=1 // pred_check_branch
      %56 = sbr.rel (0) target = $region25
    $region24: #{tpu_custom_call.1} parent=1 // pred_region
      _
    $region25: #{tpu_custom_call.1} parent=1 // pred_fallthru
      _
    // Predicated region
    $region26: #{tpu_custom_call.1} parent=1 // pred_check
      _
    $region27: #{tpu_custom_call.1} parent=1 // pred_check_branch
      %58 = sbr.rel (0) target = $region29
    $region28: #{tpu_custom_call.1} parent=1 // pred_region
      _
    $region29: #{tpu_custom_call.1} parent=1 // pred_fallthru
      _
    // Predicated region
    $region30: #{tpu_custom_call.1} parent=1 // pred_check
      _
    $region31: #{tpu_custom_call.1} parent=1 // pred_check_branch
      %60 = sbr.rel (0) target = $region33
    $region32: #{tpu_custom_call.1} parent=1 // pred_region
      _
    $region33: #{tpu_custom_call.1} parent=1 // pred_fallthru
      _
    // Predicated region
    $region34: #{tpu_custom_call.1} parent=1 // pred_check
      _
    $region35: #{tpu_custom_call.1} parent=1 // pred_check_branch
      %62 = sbr.rel (0) target = $region37
    $region36: #{tpu_custom_call.1} parent=1 // pred_region
      %s64 = ssub.s32 2048, 2048
      %65 = vsyncadd [#allocation7], %s64
      %s66 = sshll.u32 [#allocation8], 4
      %s67 = int_to_ptr.vmem [resolvable:$true] %s66
      %72 = dma.hbm_to_vmem [thread:$0]  %s8, 2048, %s67, [#allocation7], 128, 128, 8
    $region37: #{tpu_custom_call.1} parent=1 // pred_fallthru
      _
    // Predicated region
    $region38: #{tpu_custom_call.1} parent=1 // pred_check
      _
    $region39: #{tpu_custom_call.1} parent=1 // pred_check_branch
      %74 = sbr.rel (0) target = $region41
    $region40: #{tpu_custom_call.1} parent=1 // pred_region
      _
    $region41: #{tpu_custom_call.1} parent=1 // pred_fallthru
      _
    // Predicated region
    $region42: #{tpu_custom_call.1} parent=1 // pred_check
      _
    $region43: #{tpu_custom_call.1} parent=1 // pred_check_branch
      %76 = sbr.rel (0) target = $region45
    $region44: #{tpu_custom_call.1} parent=1 // pred_region
      %s78 = ssub.s32 2048, 2048
      %79 = vsyncadd [#allocation10], %s78
      %s80 = sshll.u32 [#allocation9], 4
      %s81 = int_to_ptr.vmem [resolvable:$true] %s80
      %86 = dma.hbm_to_vmem [thread:$0]  %s10, 2048, %s81, [#allocation10], 64, 64, 4
    $region45: #{tpu_custom_call.1} parent=1 // pred_fallthru
      _
    // Predicated region
    $region46: #{tpu_custom_call.1} parent=1 // pred_check
      _
    $region47: #{tpu_custom_call.1} parent=1 // pred_check_branch
      %88 = sbr.rel (0) target = $region49
    $region48: #{tpu_custom_call.1} parent=1 // pred_region
      _
    $region49: #{tpu_custom_call.1} parent=1 // pred_fallthru
      _
    // Predicated region
    $region50: #{tpu_custom_call.1} parent=1 // pred_check
      _
    $region51: #{tpu_custom_call.1} parent=1 // pred_check_branch
      %90 = sbr.rel (0) target = $region53
    $region52: #{tpu_custom_call.1} parent=1 // pred_region
      %91 = dma.done [#allocation4], 8192
    $region53: #{tpu_custom_call.1} parent=1 // pred_fallthru
      _
    // Predicated region
    $region54: #{tpu_custom_call.1} parent=1 // pred_check
      _
    $region55: #{tpu_custom_call.1} parent=1 // pred_check_branch
      %93 = sbr.rel (0) target = $region57
    $region56: #{tpu_custom_call.1} parent=1 // pred_region
      %94 = dma.done [#allocation7], 4096
    $region57: #{tpu_custom_call.1} parent=1 // pred_fallthru
      _
    // Predicated region
    $region58: #{tpu_custom_call.1} parent=1 // pred_check
      _
    $region59: #{tpu_custom_call.1} parent=1 // pred_check_branch
      %96 = sbr.rel (0) target = $region61
    $region60: #{tpu_custom_call.1} parent=1 // pred_region
      %97 = dma.done [#allocation7], 2048
    $region61: #{tpu_custom_call.1} parent=1 // pred_fallthru
      _
    // Predicated region
    $region62: #{tpu_custom_call.1} parent=1 // pred_check
      _
    $region63: #{tpu_custom_call.1} parent=1 // pred_check_branch
      %99 = sbr.rel (0) target = $region65
    $region64: #{tpu_custom_call.1} parent=1 // pred_region
      %100 = dma.done [#allocation10], 2048
    $region65: #{tpu_custom_call.1} parent=1 // pred_fallthru
      _
    %v102 = vld [vmem:[%s0] sm:$0xff]
    %v103 = vld [vmem:[%s0 + $0x8] sm:$0xff]
    %v104 = vld [vmem:[%s0 + $0x10] sm:$0xff]
    %v105 = vld [vmem:[%s0 + $0x18] sm:$0xff]
    %v106 = vld [vmem:[%s0 + $0x20] sm:$0xff]
    %v107 = vld [vmem:[%s0 + $0x28] sm:$0xff]
    %v108 = vld [vmem:[%s0 + $0x30] sm:$0xff]
    %v109 = vld [vmem:[%s0 + $0x38] sm:$0xff]
    %v110 = vpack.c.bf16 %v103, %v102
    %v111 = vpack.c.bf16 %v105, %v104
    %v112 = vpack.c.bf16 %v107, %v106
    %v113 = vpack.c.bf16 %v109, %v108
    %v114 = vld [vmem:[%s1] sm:$0xff]
    %v115 = vld [vmem:[%s1 + $0x8] sm:$0xff]
    %v116 = vld [vmem:[%s1 + $0x10] sm:$0xff]
    %v117 = vld [vmem:[%s1 + $0x18] sm:$0xff]
    %v118 = vld [vmem:[%s2] sm:$0x3]
    %v120 = vlaneseq
    %v121 = vshrl.u32 %v120, 7
    %v122 = vsub.s32 0, %v121
    %v123 = vrot.slane %v118, %v122
    %v124 = vlaneseq
    %v125 = vshrl.u32 %v124, 7
    %v126 = vsub.s32 1, %v125
    %v127 = vrot.slane %v118, %v126
    %v134 = vunpack.c.l.b16 %v114
    %v135 = vunpack.c.h.b16 %v114
    %v136 = vunpack.c.l.b16 %v115
    %v137 = vunpack.c.h.b16 %v115
    %v138 = vunpack.c.l.b16 %v116
    %v139 = vunpack.c.h.b16 %v116
    %v140 = vunpack.c.l.b16 %v117
    %v141 = vunpack.c.h.b16 %v117
    %v142 = vpack.c.b16 %v136, %v134
    %v143 = vpack.c.b16 %v137, %v135
    %v144 = vpack.c.b16 %v140, %v138
    %v145 = vpack.c.b16 %v141, %v139
    %vm150 = vcmask 261120
    %v152 = vsel %vm150, %v110, 0
    %v155 = vsel %vm150, %v111, 0
    %v158 = vsel %vm150, %v112, 0
    %v161 = vsel %vm150, %v113, 0
    %163 = vmatprep.subr.bf16.mxu0 0
    %164 = vmatpush1.bf16.msra.mxu0 0
    %165 = vmatprep.subr.bf16.mxu0 0
    %166 = vmatpush1.bf16.msra.mxu0 0
    %167 = vmatprep.subr.bf16.mxu0 0
    %168 = vmatpush1.bf16.msra.mxu0 0
    %169 = vmatprep.subr.bf16.mxu0 0
    %170 = vmatpush1.bf16.msra.mxu0 0
    %171 = vmatprep.subr.bf16.mxu0 0
    %172 = vmatpush1.bf16.msra.mxu0 0
    %173 = vmatprep.subr.bf16.mxu0 0
    %174 = vmatpush1.bf16.msra.mxu0 0
    %175 = vmatprep.subr.bf16.mxu0 %v145
    %176 = vmatpush1.bf16.msra.mxu0 %v144
    %177 = vmatprep.subr.bf16.mxu0 %v143
    %178 = vmatpush1.bf16.msra.mxu0 %v142
    %179 = vmatprep.subr.bf16.mxu0 0
    %180 = vmatpush2.bf16.msra.mxu0 0
    %181 = vmatprep.subr.bf16.mxu0 0
    %182 = vmatpush2.bf16.msra.mxu0 0
    %183 = vmatprep.subr.bf16.mxu0 0
    %184 = vmatpush2.bf16.msra.mxu0 0
    %185 = vmatprep.subr.bf16.mxu0 0
    %186 = vmatpush2.bf16.msra.mxu0 0
    %187 = vmatprep.subr.bf16.mxu0 0
    %188 = vmatpush2.bf16.msra.mxu0 0
    %189 = vmatprep.subr.bf16.mxu0 0
    %190 = vmatpush2.bf16.msra.mxu0 0
    %191 = vmatprep.subr.bf16.mxu0 0
    %192 = vmatpush2.bf16.msra.mxu0 0
    %193 = vmatprep.subr.bf16.mxu0 0
    %194 = vmatpush2.bf16.msra.mxu0 0
    %195 = vmatprep.mubr.bf16.mxu0 0
    %196 = vmatmul.mubr.bf16.gmra.mxu0 %v152
    %v197 = vpop.f32.mrf.mxu0
    %v198 = vadd.f32 %v123, %v197
    %v199 = vpop.f32.mrf.mxu0
    %v200 = vadd.f32 %v127, %v199
    %v201 = vpop.f32.mrf.mxu0
    %v202 = vadd.f32 %v123, %v201
    %v203 = vpop.f32.mrf.mxu0
    %v204 = vadd.f32 %v127, %v203
    %205 = vmatprep.mubr.bf16.mxu0 0
    %206 = vmatmul.mubr.bf16.gmra.mxu0 %v155
    %v207 = vpop.f32.mrf.mxu0
    %v208 = vadd.f32 %v123, %v207
    %v209 = vpop.f32.mrf.mxu0
    %v210 = vadd.f32 %v127, %v209
    %v211 = vpop.f32.mrf.mxu0
    %v212 = vadd.f32 %v123, %v211
    %v213 = vpop.f32.mrf.mxu0
    %v214 = vadd.f32 %v127, %v213
    %215 = vmatprep.mubr.bf16.mxu0 0
    %216 = vmatmul.mubr.bf16.gmra.mxu0 %v158
    %v217 = vpop.f32.mrf.mxu0
    %v218 = vadd.f32 %v123, %v217
    %v219 = vpop.f32.mrf.mxu0
    %v220 = vadd.f32 %v127, %v219
    %v221 = vpop.f32.mrf.mxu0
    %v222 = vadd.f32 %v123, %v221
    %v223 = vpop.f32.mrf.mxu0
    %v224 = vadd.f32 %v127, %v223
    %225 = vmatprep.mubr.bf16.mxu0 0
    %226 = vmatmul.mubr.bf16.gmra.mxu0 %v161
    %v227 = vpop.f32.mrf.mxu0
    %v228 = vadd.f32 %v123, %v227
    %v229 = vpop.f32.mrf.mxu0
    %v230 = vadd.f32 %v127, %v229
    %v231 = vpop.f32.mrf.mxu0
    %v232 = vadd.f32 %v123, %v231
    %v233 = vpop.f32.mrf.mxu0
    %v234 = vadd.f32 %v127, %v233
    %235 = vdwg.mxu0
    %v236 = vmax.f32 %v198, 0.0
    %v237 = vmax.f32 %v200, 0.0
    %v238 = vmax.f32 %v202, 0.0
    %v239 = vmax.f32 %v204, 0.0
    %v240 = vmax.f32 %v208, 0.0
    %v241 = vmax.f32 %v210, 0.0
    %v242 = vmax.f32 %v212, 0.0
    %v243 = vmax.f32 %v214, 0.0
    %v244 = vmax.f32 %v218, 0.0
    %v245 = vmax.f32 %v220, 0.0
    %v246 = vmax.f32 %v222, 0.0
    %v247 = vmax.f32 %v224, 0.0
    %v248 = vmax.f32 %v228, 0.0
    %v249 = vmax.f32 %v230, 0.0
    %v250 = vmax.f32 %v232, 0.0
    %v251 = vmax.f32 %v234, 0.0
    %v252 = vpack.c.bf16 %v238, %v236
    %v253 = vpack.c.bf16 %v239, %v237
    %v254 = vpack.c.bf16 %v242, %v240
    %v255 = vpack.c.bf16 %v243, %v241
    %v256 = vpack.c.bf16 %v246, %v244
    %v257 = vpack.c.bf16 %v247, %v245
    %v258 = vpack.c.bf16 %v250, %v248
    %v259 = vpack.c.bf16 %v251, %v249
    %v260 = vld [vmem:[#allocation3] sm:$0xff]
    %v261 = vld [vmem:[#allocation3 + $0x8] sm:$0xff]
    %v262 = vld [vmem:[#allocation3 + $0x10] sm:$0xff]
    %v263 = vld [vmem:[#allocation3 + $0x18] sm:$0xff]
    %v264 = vld [vmem:[#allocation3 + $0x20] sm:$0xff]
    %v265 = vld [vmem:[#allocation3 + $0x28] sm:$0xff]
    %v266 = vld [vmem:[#allocation3 + $0x30] sm:$0xff]
    %v267 = vld [vmem:[#allocation3 + $0x38] sm:$0xff]
    %v268 = vld [vmem:[#allocation3 + $0x40] sm:$0xff]
    %v269 = vld [vmem:[#allocation3 + $0x48] sm:$0xff]
    %v270 = vld [vmem:[#allocation3 + $0x50] sm:$0xff]
    %v271 = vld [vmem:[#allocation3 + $0x58] sm:$0xff]
    %v272 = vld [vmem:[#allocation3 + $0x60] sm:$0xff]
    %v273 = vld [vmem:[#allocation3 + $0x68] sm:$0xff]
    %v274 = vld [vmem:[#allocation3 + $0x70] sm:$0xff]
    %v275 = vld [vmem:[#allocation3 + $0x78] sm:$0xff]
    %v276 = vld [vmem:[#allocation3 + $0x80] sm:$0xff]
    %v277 = vld [vmem:[#allocation3 + $0x88] sm:$0xff]
    %v278 = vld [vmem:[#allocation3 + $0x90] sm:$0xff]
    %v279 = vld [vmem:[#allocation3 + $0x98] sm:$0xff]
    %v280 = vld [vmem:[#allocation3 + $0xa0] sm:$0xff]
    %v281 = vld [vmem:[#allocation3 + $0xa8] sm:$0xff]
    %v282 = vld [vmem:[#allocation3 + $0xb0] sm:$0xff]
    %v283 = vld [vmem:[#allocation3 + $0xb8] sm:$0xff]
    %v284 = vld [vmem:[#allocation3 + $0xc0] sm:$0xff]
    %v285 = vld [vmem:[#allocation3 + $0xc8] sm:$0xff]
    %v286 = vld [vmem:[#allocation3 + $0xd0] sm:$0xff]
    %v287 = vld [vmem:[#allocation3 + $0xd8] sm:$0xff]
    %v288 = vld [vmem:[#allocation3 + $0xe0] sm:$0xff]
    %v289 = vld [vmem:[#allocation3 + $0xe8] sm:$0xff]
    %v290 = vld [vmem:[#allocation3 + $0xf0] sm:$0xff]
    %v291 = vld [vmem:[#allocation3 + $0xf8] sm:$0xff]
    %v292 = vld [vmem:[#allocation3 + $0x100] sm:$0xff]
    %v293 = vld [vmem:[#allocation3 + $0x108] sm:$0xff]
    %v294 = vld [vmem:[#allocation3 + $0x110] sm:$0xff]
    %v295 = vld [vmem:[#allocation3 + $0x118] sm:$0xff]
    %v296 = vld [vmem:[#allocation3 + $0x120] sm:$0xff]
    %v297 = vld [vmem:[#allocation3 + $0x128] sm:$0xff]
    %v298 = vld [vmem:[#allocation3 + $0x130] sm:$0xff]
    %v299 = vld [vmem:[#allocation3 + $0x138] sm:$0xff]
    %v300 = vld [vmem:[#allocation3 + $0x140] sm:$0xff]
    %v301 = vld [vmem:[#allocation3 + $0x148] sm:$0xff]
    %v302 = vld [vmem:[#allocation3 + $0x150] sm:$0xff]
    %v303 = vld [vmem:[#allocation3 + $0x158] sm:$0xff]
    %v304 = vld [vmem:[#allocation3 + $0x160] sm:$0xff]
    %v305 = vld [vmem:[#allocation3 + $0x168] sm:$0xff]
    %v306 = vld [vmem:[#allocation3 + $0x170] sm:$0xff]
    %v307 = vld [vmem:[#allocation3 + $0x178] sm:$0xff]
    %v308 = vld [vmem:[#allocation3 + $0x180] sm:$0xff]
    %v309 = vld [vmem:[#allocation3 + $0x188] sm:$0xff]
    %v310 = vld [vmem:[#allocation3 + $0x190] sm:$0xff]
    %v311 = vld [vmem:[#allocation3 + $0x198] sm:$0xff]
    %v312 = vld [vmem:[#allocation3 + $0x1a0] sm:$0xff]
    %v313 = vld [vmem:[#allocation3 + $0x1a8] sm:$0xff]
    %v314 = vld [vmem:[#allocation3 + $0x1b0] sm:$0xff]
    %v315 = vld [vmem:[#allocation3 + $0x1b8] sm:$0xff]
    %v316 = vld [vmem:[#allocation3 + $0x1c0] sm:$0xff]
    %v317 = vld [vmem:[#allocation3 + $0x1c8] sm:$0xff]
    %v318 = vld [vmem:[#allocation3 + $0x1d0] sm:$0xff]
    %v319 = vld [vmem:[#allocation3 + $0x1d8] sm:$0xff]
    %v320 = vld [vmem:[#allocation3 + $0x1e0] sm:$0xff]
    %v321 = vld [vmem:[#allocation3 + $0x1e8] sm:$0xff]
    %v322 = vld [vmem:[#allocation3 + $0x1f0] sm:$0xff]
    %v323 = vld [vmem:[#allocation3 + $0x1f8] sm:$0xff]
    %v324 = vld [vmem:[%s5] sm:$0xf]
    %v326 = vlaneseq
    %v327 = vshrl.u32 %v326, 7
    %v328 = vsub.s32 0, %v327
    %v329 = vrot.slane %v324, %v328
    %v330 = vlaneseq
    %v331 = vshrl.u32 %v330, 7
    %v332 = vsub.s32 1, %v331
    %v333 = vrot.slane %v324, %v332
    %v334 = vlaneseq
    %v335 = vshrl.u32 %v334, 7
    %v336 = vsub.s32 2, %v335
    %v337 = vrot.slane %v324, %v336
    %v338 = vlaneseq
    %v339 = vshrl.u32 %v338, 7
    %v340 = vsub.s32 3, %v339
    %v341 = vrot.slane %v324, %v340
    %v410 = vunpack.c.l.b16 %v260
    %v411 = vunpack.c.h.b16 %v260
    %v412 = vunpack.c.l.b16 %v261
    %v413 = vunpack.c.h.b16 %v261
    %v414 = vunpack.c.l.b16 %v262
    %v415 = vunpack.c.h.b16 %v262
    %v416 = vunpack.c.l.b16 %v263
    %v417 = vunpack.c.h.b16 %v263
    %v418 = vunpack.c.l.b16 %v264
    %v419 = vunpack.c.h.b16 %v264
    %v420 = vunpack.c.l.b16 %v265
    %v421 = vunpack.c.h.b16 %v265
    %v422 = vunpack.c.l.b16 %v266
    %v423 = vunpack.c.h.b16 %v266
    %v424 = vunpack.c.l.b16 %v267
    %v425 = vunpack.c.h.b16 %v267
    %v426 = vunpack.c.l.b16 %v268
    %v427 = vunpack.c.h.b16 %v268
    %v428 = vunpack.c.l.b16 %v269
    %v429 = vunpack.c.h.b16 %v269
    %v430 = vunpack.c.l.b16 %v270
    %v431 = vunpack.c.h.b16 %v270
    %v432 = vunpack.c.l.b16 %v271
    %v433 = vunpack.c.h.b16 %v271
    %v434 = vunpack.c.l.b16 %v272
    %v435 = vunpack.c.h.b16 %v272
    %v436 = vunpack.c.l.b16 %v273
    %v437 = vunpack.c.h.b16 %v273
    %v438 = vunpack.c.l.b16 %v274
    %v439 = vunpack.c.h.b16 %v274
    %v440 = vunpack.c.l.b16 %v275
    %v441 = vunpack.c.h.b16 %v275
    %v442 = vunpack.c.l.b16 %v276
    %v443 = vunpack.c.h.b16 %v276
    %v444 = vunpack.c.l.b16 %v277
    %v445 = vunpack.c.h.b16 %v277
    %v446 = vunpack.c.l.b16 %v278
    %v447 = vunpack.c.h.b16 %v278
    %v448 = vunpack.c.l.b16 %v279
    %v449 = vunpack.c.h.b16 %v279
    %v450 = vunpack.c.l.b16 %v280
    %v451 = vunpack.c.h.b16 %v280
    %v452 = vunpack.c.l.b16 %v281
    %v453 = vunpack.c.h.b16 %v281
    %v454 = vunpack.c.l.b16 %v282
    %v455 = vunpack.c.h.b16 %v282
    %v456 = vunpack.c.l.b16 %v283
    %v457 = vunpack.c.h.b16 %v283
    %v458 = vunpack.c.l.b16 %v284
    %v459 = vunpack.c.h.b16 %v284
    %v460 = vunpack.c.l.b16 %v285
    %v461 = vunpack.c.h.b16 %v285
    %v462 = vunpack.c.l.b16 %v286
    %v463 = vunpack.c.h.b16 %v286
    %v464 = vunpack.c.l.b16 %v287
    %v465 = vunpack.c.h.b16 %v287
    %v466 = vunpack.c.l.b16 %v288
    %v467 = vunpack.c.h.b16 %v288
    %v468 = vunpack.c.l.b16 %v289
    %v469 = vunpack.c.h.b16 %v289
    %v470 = vunpack.c.l.b16 %v290
    %v471 = vunpack.c.h.b16 %v290
    %v472 = vunpack.c.l.b16 %v291
    %v473 = vunpack.c.h.b16 %v291
    %v474 = vunpack.c.l.b16 %v292
    %v475 = vunpack.c.h.b16 %v292
    %v476 = vunpack.c.l.b16 %v293
    %v477 = vunpack.c.h.b16 %v293
    %v478 = vunpack.c.l.b16 %v294
    %v479 = vunpack.c.h.b16 %v294
    %v480 = vunpack.c.l.b16 %v295
    %v481 = vunpack.c.h.b16 %v295
    %v482 = vunpack.c.l.b16 %v296
    %v483 = vunpack.c.h.b16 %v296
    %v484 = vunpack.c.l.b16 %v297
    %v485 = vunpack.c.h.b16 %v297
    %v486 = vunpack.c.l.b16 %v298
    %v487 = vunpack.c.h.b16 %v298
    %v488 = vunpack.c.l.b16 %v299
    %v489 = vunpack.c.h.b16 %v299
    %v490 = vunpack.c.l.b16 %v300
    %v491 = vunpack.c.h.b16 %v300
    %v492 = vunpack.c.l.b16 %v301
    %v493 = vunpack.c.h.b16 %v301
    %v494 = vunpack.c.l.b16 %v302
    %v495 = vunpack.c.h.b16 %v302
    %v496 = vunpack.c.l.b16 %v303
    %v497 = vunpack.c.h.b16 %v303
    %v498 = vunpack.c.l.b16 %v304
    %v499 = vunpack.c.h.b16 %v304
    %v500 = vunpack.c.l.b16 %v305
    %v501 = vunpack.c.h.b16 %v305
    %v502 = vunpack.c.l.b16 %v306
    %v503 = vunpack.c.h.b16 %v306
    %v504 = vunpack.c.l.b16 %v307
    %v505 = vunpack.c.h.b16 %v307
    %v506 = vunpack.c.l.b16 %v308
    %v507 = vunpack.c.h.b16 %v308
    %v508 = vunpack.c.l.b16 %v309
    %v509 = vunpack.c.h.b16 %v309
    %v510 = vunpack.c.l.b16 %v310
    %v511 = vunpack.c.h.b16 %v310
    %v512 = vunpack.c.l.b16 %v311
    %v513 = vunpack.c.h.b16 %v311
    %v514 = vunpack.c.l.b16 %v312
    %v515 = vunpack.c.h.b16 %v312
    %v516 = vunpack.c.l.b16 %v313
    %v517 = vunpack.c.h.b16 %v313
    %v518 = vunpack.c.l.b16 %v314
    %v519 = vunpack.c.h.b16 %v314
    %v520 = vunpack.c.l.b16 %v315
    %v521 = vunpack.c.h.b16 %v315
    %v522 = vunpack.c.l.b16 %v316
    %v523 = vunpack.c.h.b16 %v316
    %v524 = vunpack.c.l.b16 %v317
    %v525 = vunpack.c.h.b16 %v317
    %v526 = vunpack.c.l.b16 %v318
    %v527 = vunpack.c.h.b16 %v318
    %v528 = vunpack.c.l.b16 %v319
    %v529 = vunpack.c.h.b16 %v319
    %v530 = vunpack.c.l.b16 %v320
    %v531 = vunpack.c.h.b16 %v320
    %v532 = vunpack.c.l.b16 %v321
    %v533 = vunpack.c.h.b16 %v321
    %v534 = vunpack.c.l.b16 %v322
    %v535 = vunpack.c.h.b16 %v322
    %v536 = vunpack.c.l.b16 %v323
    %v537 = vunpack.c.h.b16 %v323
    %v538 = vpack.c.b16 %v414, %v410
    %v539 = vpack.c.b16 %v415, %v411
    %v540 = vpack.c.b16 %v416, %v412
    %v541 = vpack.c.b16 %v417, %v413
    %v542 = vpack.c.b16 %v422, %v418
    %v543 = vpack.c.b16 %v423, %v419
    %v544 = vpack.c.b16 %v424, %v420
    %v545 = vpack.c.b16 %v425, %v421
    %v546 = vpack.c.b16 %v430, %v426
    %v547 = vpack.c.b16 %v431, %v427
    %v548 = vpack.c.b16 %v432, %v428
    %v549 = vpack.c.b16 %v433, %v429
    %v550 = vpack.c.b16 %v438, %v434
    %v551 = vpack.c.b16 %v439, %v435
    %v552 = vpack.c.b16 %v440, %v436
    %v553 = vpack.c.b16 %v441, %v437
    %v554 = vpack.c.b16 %v446, %v442
    %v555 = vpack.c.b16 %v447, %v443
    %v556 = vpack.c.b16 %v448, %v444
    %v557 = vpack.c.b16 %v449, %v445
    %v558 = vpack.c.b16 %v454, %v450
    %v559 = vpack.c.b16 %v455, %v451
    %v560 = vpack.c.b16 %v456, %v452
    %v561 = vpack.c.b16 %v457, %v453
    %v562 = vpack.c.b16 %v462, %v458
    %v563 = vpack.c.b16 %v463, %v459
    %v564 = vpack.c.b16 %v464, %v460
    %v565 = vpack.c.b16 %v465, %v461
    %v566 = vpack.c.b16 %v470, %v466
    %v567 = vpack.c.b16 %v471, %v467
    %v568 = vpack.c.b16 %v472, %v468
    %v569 = vpack.c.b16 %v473, %v469
    %v570 = vpack.c.b16 %v478, %v474
    %v571 = vpack.c.b16 %v479, %v475
    %v572 = vpack.c.b16 %v480, %v476
    %v573 = vpack.c.b16 %v481, %v477
    %v574 = vpack.c.b16 %v486, %v482
    %v575 = vpack.c.b16 %v487, %v483
    %v576 = vpack.c.b16 %v488, %v484
    %v577 = vpack.c.b16 %v489, %v485
    %v578 = vpack.c.b16 %v494, %v490
    %v579 = vpack.c.b16 %v495, %v491
    %v580 = vpack.c.b16 %v496, %v492
    %v581 = vpack.c.b16 %v497, %v493
    %v582 = vpack.c.b16 %v502, %v498
    %v583 = vpack.c.b16 %v503, %v499
    %v584 = vpack.c.b16 %v504, %v500
    %v585 = vpack.c.b16 %v505, %v501
    %v586 = vpack.c.b16 %v510, %v506
    %v587 = vpack.c.b16 %v511, %v507
    %v588 = vpack.c.b16 %v512, %v508
    %v589 = vpack.c.b16 %v513, %v509
    %v590 = vpack.c.b16 %v518, %v514
    %v591 = vpack.c.b16 %v519, %v515
    %v592 = vpack.c.b16 %v520, %v516
    %v593 = vpack.c.b16 %v521, %v517
    %v594 = vpack.c.b16 %v526, %v522
    %v595 = vpack.c.b16 %v527, %v523
    %v596 = vpack.c.b16 %v528, %v524
    %v597 = vpack.c.b16 %v529, %v525
    %v598 = vpack.c.b16 %v534, %v530
    %v599 = vpack.c.b16 %v535, %v531
    %v600 = vpack.c.b16 %v536, %v532
    %v601 = vpack.c.b16 %v537, %v533
    %666 = vmatprep.subr.bf16.mxu0 %v567
    %667 = vmatpush1.bf16.msra.mxu0 %v566
    %668 = vmatprep.subr.bf16.mxu0 %v563
    %669 = vmatpush1.bf16.msra.mxu0 %v562
    %670 = vmatprep.subr.bf16.mxu0 %v559
    %671 = vmatpush1.bf16.msra.mxu0 %v558
    %672 = vmatprep.subr.bf16.mxu0 %v555
    %673 = vmatpush1.bf16.msra.mxu0 %v554
    %674 = vmatprep.subr.bf16.mxu0 %v551
    %675 = vmatpush1.bf16.msra.mxu0 %v550
    %676 = vmatprep.subr.bf16.mxu0 %v547
    %677 = vmatpush1.bf16.msra.mxu0 %v546
    %678 = vmatprep.subr.bf16.mxu0 %v543
    %679 = vmatpush1.bf16.msra.mxu0 %v542
    %680 = vmatprep.subr.bf16.mxu0 %v539
    %681 = vmatpush1.bf16.msra.mxu0 %v538
    %682 = vmatprep.subr.bf16.mxu0 %v599
    %683 = vmatpush2.bf16.msra.mxu0 %v598
    %684 = vmatprep.subr.bf16.mxu0 %v595
    %685 = vmatpush2.bf16.msra.mxu0 %v594
    %686 = vmatprep.subr.bf16.mxu0 %v591
    %687 = vmatpush2.bf16.msra.mxu0 %v590
    %688 = vmatprep.subr.bf16.mxu0 %v587
    %689 = vmatpush2.bf16.msra.mxu0 %v586
    %690 = vmatprep.subr.bf16.mxu0 %v583
    %691 = vmatpush2.bf16.msra.mxu0 %v582
    %692 = vmatprep.subr.bf16.mxu0 %v579
    %693 = vmatpush2.bf16.msra.mxu0 %v578
    %694 = vmatprep.subr.bf16.mxu0 %v575
    %695 = vmatpush2.bf16.msra.mxu0 %v574
    %696 = vmatprep.subr.bf16.mxu0 %v571
    %697 = vmatpush2.bf16.msra.mxu0 %v570
    %698 = vmatprep.mubr.bf16.mxu0 %v253
    %699 = vmatmul.mubr.bf16.gmra.mxu0 %v252
    %v700 = vpop.f32.mrf.mxu0
    %v701 = vadd.f32 %v329, %v700
    %v702 = vpop.f32.mrf.mxu0
    %v703 = vadd.f32 %v333, %v702
    %v704 = vpop.f32.mrf.mxu0
    %v705 = vadd.f32 %v329, %v704
    %v706 = vpop.f32.mrf.mxu0
    %v707 = vadd.f32 %v333, %v706
    %708 = vmatprep.mubr.bf16.mxu0 %v255
    %709 = vmatmul.mubr.bf16.gmra.mxu0 %v254
    %v710 = vpop.f32.mrf.mxu0
    %v711 = vadd.f32 %v329, %v710
    %v712 = vpop.f32.mrf.mxu0
    %v713 = vadd.f32 %v333, %v712
    %v714 = vpop.f32.mrf.mxu0
    %v715 = vadd.f32 %v329, %v714
    %v716 = vpop.f32.mrf.mxu0
    %v717 = vadd.f32 %v333, %v716
    %718 = vmatprep.mubr.bf16.mxu0 %v257
    %719 = vmatmul.mubr.bf16.gmra.mxu0 %v256
    %v720 = vpop.f32.mrf.mxu0
    %v721 = vadd.f32 %v329, %v720
    %v722 = vpop.f32.mrf.mxu0
    %v723 = vadd.f32 %v333, %v722
    %v724 = vpop.f32.mrf.mxu0
    %v725 = vadd.f32 %v329, %v724
    %v726 = vpop.f32.mrf.mxu0
    %v727 = vadd.f32 %v333, %v726
    %728 = vmatprep.mubr.bf16.mxu0 %v259
    %729 = vmatmul.mubr.bf16.gmra.mxu0 %v258
    %v730 = vpop.f32.mrf.mxu0
    %v731 = vadd.f32 %v329, %v730
    %v732 = vpop.f32.mrf.mxu0
    %v733 = vadd.f32 %v333, %v732
    %v734 = vpop.f32.mrf.mxu0
    %v735 = vadd.f32 %v329, %v734
    %v736 = vpop.f32.mrf.mxu0
    %v737 = vadd.f32 %v333, %v736
    %738 = vdwg.mxu0
    %739 = vmatprep.subr.bf16.mxu0 %v569
    %740 = vmatpush1.bf16.msra.mxu0 %v568
    %741 = vmatprep.subr.bf16.mxu0 %v565
    %742 = vmatpush1.bf16.msra.mxu0 %v564
    %743 = vmatprep.subr.bf16.mxu0 %v561
    %744 = vmatpush1.bf16.msra.mxu0 %v560
    %745 = vmatprep.subr.bf16.mxu0 %v557
    %746 = vmatpush1.bf16.msra.mxu0 %v556
    %747 = vmatprep.subr.bf16.mxu0 %v553
    %748 = vmatpush1.bf16.msra.mxu0 %v552
    %749 = vmatprep.subr.bf16.mxu0 %v549
    %750 = vmatpush1.bf16.msra.mxu0 %v548
    %751 = vmatprep.subr.bf16.mxu0 %v545
    %752 = vmatpush1.bf16.msra.mxu0 %v544
    %753 = vmatprep.subr.bf16.mxu0 %v541
    %754 = vmatpush1.bf16.msra.mxu0 %v540
    %755 = vmatprep.subr.bf16.mxu0 %v601
    %756 = vmatpush2.bf16.msra.mxu0 %v600
    %757 = vmatprep.subr.bf16.mxu0 %v597
    %758 = vmatpush2.bf16.msra.mxu0 %v596
    %759 = vmatprep.subr.bf16.mxu0 %v593
    %760 = vmatpush2.bf16.msra.mxu0 %v592
    %761 = vmatprep.subr.bf16.mxu0 %v589
    %762 = vmatpush2.bf16.msra.mxu0 %v588
    %763 = vmatprep.subr.bf16.mxu0 %v585
    %764 = vmatpush2.bf16.msra.mxu0 %v584
    %765 = vmatprep.subr.bf16.mxu0 %v581
    %766 = vmatpush2.bf16.msra.mxu0 %v580
    %767 = vmatprep.subr.bf16.mxu0 %v577
    %768 = vmatpush2.bf16.msra.mxu0 %v576
    %769 = vmatprep.subr.bf16.mxu0 %v573
    %770 = vmatpush2.bf16.msra.mxu0 %v572
    %771 = vmatprep.mubr.bf16.mxu0 %v253
    %772 = vmatmul.mubr.bf16.gmra.mxu0 %v252
    %v773 = vpop.f32.mrf.mxu0
    %v774 = vadd.f32 %v337, %v773
    %v775 = vpop.f32.mrf.mxu0
    %v776 = vadd.f32 %v341, %v775
    %v777 = vpop.f32.mrf.mxu0
    %v778 = vadd.f32 %v337, %v777
    %v779 = vpop.f32.mrf.mxu0
    %v780 = vadd.f32 %v341, %v779
    %781 = vmatprep.mubr.bf16.mxu0 %v255
    %782 = vmatmul.mubr.bf16.gmra.mxu0 %v254
    %v783 = vpop.f32.mrf.mxu0
    %v784 = vadd.f32 %v337, %v783
    %v785 = vpop.f32.mrf.mxu0
    %v786 = vadd.f32 %v341, %v785
    %v787 = vpop.f32.mrf.mxu0
    %v788 = vadd.f32 %v337, %v787
    %v789 = vpop.f32.mrf.mxu0
    %v790 = vadd.f32 %v341, %v789
    %791 = vmatprep.mubr.bf16.mxu0 %v257
    %792 = vmatmul.mubr.bf16.gmra.mxu0 %v256
    %v793 = vpop.f32.mrf.mxu0
    %v794 = vadd.f32 %v337, %v793
    %v795 = vpop.f32.mrf.mxu0
    %v796 = vadd.f32 %v341, %v795
    %v797 = vpop.f32.mrf.mxu0
    %v798 = vadd.f32 %v337, %v797
    %v799 = vpop.f32.mrf.mxu0
    %v800 = vadd.f32 %v341, %v799
    %801 = vmatprep.mubr.bf16.mxu0 %v259
    %802 = vmatmul.mubr.bf16.gmra.mxu0 %v258
    %v803 = vpop.f32.mrf.mxu0
    %v804 = vadd.f32 %v337, %v803
    %v805 = vpop.f32.mrf.mxu0
    %v806 = vadd.f32 %v341, %v805
    %v807 = vpop.f32.mrf.mxu0
    %v808 = vadd.f32 %v337, %v807
    %v809 = vpop.f32.mrf.mxu0
    %v810 = vadd.f32 %v341, %v809
    %811 = vdwg.mxu0
    %812 = vst [vmem:[#allocation2] sm:$0xff] %v701
    %813 = vst [vmem:[#allocation2 + $0x8] sm:$0xff] %v703
    %814 = vst [vmem:[#allocation2 + $0x10] sm:$0xff] %v774
    %815 = vst [vmem:[#allocation2 + $0x18] sm:$0xff] %v776
    %816 = vst [vmem:[#allocation2 + $0x20] sm:$0xff] %v705
    %817 = vst [vmem:[#allocation2 + $0x28] sm:$0xff] %v707
    %818 = vst [vmem:[#allocation2 + $0x30] sm:$0xff] %v778
    %819 = vst [vmem:[#allocation2 + $0x38] sm:$0xff] %v780
    %820 = vst [vmem:[#allocation2 + $0x40] sm:$0xff] %v711
    %821 = vst [vmem:[#allocation2 + $0x48] sm:$0xff] %v713
    %822 = vst [vmem:[#allocation2 + $0x50] sm:$0xff] %v784
    %823 = vst [vmem:[#allocation2 + $0x58] sm:$0xff] %v786
    %824 = vst [vmem:[#allocation2 + $0x60] sm:$0xff] %v715
    %825 = vst [vmem:[#allocation2 + $0x68] sm:$0xff] %v717
    %826 = vst [vmem:[#allocation2 + $0x70] sm:$0xff] %v788
    %827 = vst [vmem:[#allocation2 + $0x78] sm:$0xff] %v790
    %828 = vst [vmem:[#allocation2 + $0x80] sm:$0xff] %v721
    %829 = vst [vmem:[#allocation2 + $0x88] sm:$0xff] %v723
    %830 = vst [vmem:[#allocation2 + $0x90] sm:$0xff] %v794
    %831 = vst [vmem:[#allocation2 + $0x98] sm:$0xff] %v796
    %832 = vst [vmem:[#allocation2 + $0xa0] sm:$0xff] %v725
    %833 = vst [vmem:[#allocation2 + $0xa8] sm:$0xff] %v727
    %834 = vst [vmem:[#allocation2 + $0xb0] sm:$0xff] %v798
    %835 = vst [vmem:[#allocation2 + $0xb8] sm:$0xff] %v800
    %836 = vst [vmem:[#allocation2 + $0xc0] sm:$0xff] %v731
    %837 = vst [vmem:[#allocation2 + $0xc8] sm:$0xff] %v733
    %838 = vst [vmem:[#allocation2 + $0xd0] sm:$0xff] %v804
    %839 = vst [vmem:[#allocation2 + $0xd8] sm:$0xff] %v806
    %840 = vst [vmem:[#allocation2 + $0xe0] sm:$0xff] %v735
    %841 = vst [vmem:[#allocation2 + $0xe8] sm:$0xff] %v737
    %842 = vst [vmem:[#allocation2 + $0xf0] sm:$0xff] %v808
    %843 = vst [vmem:[#allocation2 + $0xf8] sm:$0xff] %v810
    %v844 = vld [vmem:[%s6] sm:$0xff]
    %v845 = vld [vmem:[%s7] sm:$0xff]
    %v846 = vld [vmem:[#allocation2] sm:$0xff]
    %v847 = vld [vmem:[#allocation2 + $0x8] sm:$0xff]
    %v848 = vld [vmem:[#allocation2 + $0x10] sm:$0xff]
    %v849 = vld [vmem:[#allocation2 + $0x18] sm:$0xff]
    %v850 = vpack.c.bf16 %v844, %v844
    %v851 = vld [vmem:[#allocation6] sm:$0xff]
    %v852 = vld [vmem:[#allocation6 + $0x8] sm:$0xff]
    %v853 = vld [vmem:[#allocation6 + $0x10] sm:$0xff]
    %v854 = vld [vmem:[#allocation6 + $0x18] sm:$0xff]
    %v855 = vld [vmem:[#allocation6 + $0x20] sm:$0xff]
    %v856 = vld [vmem:[#allocation6 + $0x28] sm:$0xff]
    %v857 = vld [vmem:[#allocation6 + $0x30] sm:$0xff]
    %v858 = vld [vmem:[#allocation6 + $0x38] sm:$0xff]
    %v859 = vld [vmem:[#allocation6 + $0x40] sm:$0xff]
    %v860 = vld [vmem:[#allocation6 + $0x48] sm:$0xff]
    %v861 = vld [vmem:[#allocation6 + $0x50] sm:$0xff]
    %v862 = vld [vmem:[#allocation6 + $0x58] sm:$0xff]
    %v863 = vld [vmem:[#allocation6 + $0x60] sm:$0xff]
    %v864 = vld [vmem:[#allocation6 + $0x68] sm:$0xff]
    %v865 = vld [vmem:[#allocation6 + $0x70] sm:$0xff]
    %v866 = vld [vmem:[#allocation6 + $0x78] sm:$0xff]
    %v867 = vld [vmem:[#allocation6 + $0x80] sm:$0xff]
    %v868 = vld [vmem:[#allocation6 + $0x88] sm:$0xff]
    %v869 = vld [vmem:[#allocation6 + $0x90] sm:$0xff]
    %v870 = vld [vmem:[#allocation6 + $0x98] sm:$0xff]
    %v871 = vld [vmem:[#allocation6 + $0xa0] sm:$0xff]
    %v872 = vld [vmem:[#allocation6 + $0xa8] sm:$0xff]
    %v873 = vld [vmem:[#allocation6 + $0xb0] sm:$0xff]
    %v874 = vld [vmem:[#allocation6 + $0xb8] sm:$0xff]
    %v875 = vld [vmem:[#allocation6 + $0xc0] sm:$0xff]
    %v876 = vld [vmem:[#allocation6 + $0xc8] sm:$0xff]
    %v877 = vld [vmem:[#allocation6 + $0xd0] sm:$0xff]
    %v878 = vld [vmem:[#allocation6 + $0xd8] sm:$0xff]
    %v879 = vld [vmem:[#allocation6 + $0xe0] sm:$0xff]
    %v880 = vld [vmem:[#allocation6 + $0xe8] sm:$0xff]
    %v881 = vld [vmem:[#allocation6 + $0xf0] sm:$0xff]
    %v882 = vld [vmem:[#allocation6 + $0xf8] sm:$0xff]
    %v915 = vunpack.c.l.b16 %v851
    %v916 = vunpack.c.h.b16 %v851
    %v917 = vunpack.c.l.b16 %v852
    %v918 = vunpack.c.h.b16 %v852
    %v919 = vunpack.c.l.b16 %v853
    %v920 = vunpack.c.h.b16 %v853
    %v921 = vunpack.c.l.b16 %v854
    %v922 = vunpack.c.h.b16 %v854
    %v923 = vunpack.c.l.b16 %v855
    %v924 = vunpack.c.h.b16 %v855
    %v925 = vunpack.c.l.b16 %v856
    %v926 = vunpack.c.h.b16 %v856
    %v927 = vunpack.c.l.b16 %v857
    %v928 = vunpack.c.h.b16 %v857
    %v929 = vunpack.c.l.b16 %v858
    %v930 = vunpack.c.h.b16 %v858
    %v931 = vunpack.c.l.b16 %v859
    %v932 = vunpack.c.h.b16 %v859
    %v933 = vunpack.c.l.b16 %v860
    %v934 = vunpack.c.h.b16 %v860
    %v935 = vunpack.c.l.b16 %v861
    %v936 = vunpack.c.h.b16 %v861
    %v937 = vunpack.c.l.b16 %v862
    %v938 = vunpack.c.h.b16 %v862
    %v939 = vunpack.c.l.b16 %v863
    %v940 = vunpack.c.h.b16 %v863
    %v941 = vunpack.c.l.b16 %v864
    %v942 = vunpack.c.h.b16 %v864
    %v943 = vunpack.c.l.b16 %v865
    %v944 = vunpack.c.h.b16 %v865
    %v945 = vunpack.c.l.b16 %v866
    %v946 = vunpack.c.h.b16 %v866
    %v947 = vunpack.c.l.b16 %v867
    %v948 = vunpack.c.h.b16 %v867
    %v949 = vunpack.c.l.b16 %v868
    %v950 = vunpack.c.h.b16 %v868
    %v951 = vunpack.c.l.b16 %v869
    %v952 = vunpack.c.h.b16 %v869
    %v953 = vunpack.c.l.b16 %v870
    %v954 = vunpack.c.h.b16 %v870
    %v955 = vunpack.c.l.b16 %v871
    %v956 = vunpack.c.h.b16 %v871
    %v957 = vunpack.c.l.b16 %v872
    %v958 = vunpack.c.h.b16 %v872
    %v959 = vunpack.c.l.b16 %v873
    %v960 = vunpack.c.h.b16 %v873
    %v961 = vunpack.c.l.b16 %v874
    %v962 = vunpack.c.h.b16 %v874
    %v963 = vunpack.c.l.b16 %v875
    %v964 = vunpack.c.h.b16 %v875
    %v965 = vunpack.c.l.b16 %v876
    %v966 = vunpack.c.h.b16 %v876
    %v967 = vunpack.c.l.b16 %v877
    %v968 = vunpack.c.h.b16 %v877
    %v969 = vunpack.c.l.b16 %v878
    %v970 = vunpack.c.h.b16 %v878
    %v971 = vunpack.c.l.b16 %v879
    %v972 = vunpack.c.h.b16 %v879
    %v973 = vunpack.c.l.b16 %v880
    %v974 = vunpack.c.h.b16 %v880
    %v975 = vunpack.c.l.b16 %v881
    %v976 = vunpack.c.h.b16 %v881
    %v977 = vunpack.c.l.b16 %v882
    %v978 = vunpack.c.h.b16 %v882
    %v979 = vpack.c.b16 %v919, %v915
    %v980 = vpack.c.b16 %v920, %v916
    %v981 = vpack.c.b16 %v921, %v917
    %v982 = vpack.c.b16 %v922, %v918
    %v983 = vpack.c.b16 %v927, %v923
    %v984 = vpack.c.b16 %v928, %v924
    %v985 = vpack.c.b16 %v929, %v925
    %v986 = vpack.c.b16 %v930, %v926
    %v987 = vpack.c.b16 %v935, %v931
    %v988 = vpack.c.b16 %v936, %v932
    %v989 = vpack.c.b16 %v937, %v933
    %v990 = vpack.c.b16 %v938, %v934
    %v991 = vpack.c.b16 %v943, %v939
    %v992 = vpack.c.b16 %v944, %v940
    %v993 = vpack.c.b16 %v945, %v941
    %v994 = vpack.c.b16 %v946, %v942
    %v995 = vpack.c.b16 %v951, %v947
    %v996 = vpack.c.b16 %v952, %v948
    %v997 = vpack.c.b16 %v953, %v949
    %v998 = vpack.c.b16 %v954, %v950
    %v999 = vpack.c.b16 %v959, %v955
    %v1000 = vpack.c.b16 %v960, %v956
    %v1001 = vpack.c.b16 %v961, %v957
    %v1002 = vpack.c.b16 %v962, %v958
    %v1003 = vpack.c.b16 %v967, %v963
    %v1004 = vpack.c.b16 %v968, %v964
    %v1005 = vpack.c.b16 %v969, %v965
    %v1006 = vpack.c.b16 %v970, %v966
    %v1007 = vpack.c.b16 %v975, %v971
    %v1008 = vpack.c.b16 %v976, %v972
    %v1009 = vpack.c.b16 %v977, %v973
    %v1010 = vpack.c.b16 %v978, %v974
    %1043 = vmatprep.subr.bf16.mxu0 %v1008
    %1044 = vmatpush1.bf16.msra.mxu0 %v1007
    %1045 = vmatprep.subr.bf16.mxu0 %v1004
    %1046 = vmatpush1.bf16.msra.mxu0 %v1003
    %1047 = vmatprep.subr.bf16.mxu0 %v1000
    %1048 = vmatpush1.bf16.msra.mxu0 %v999
    %1049 = vmatprep.subr.bf16.mxu0 %v996
    %1050 = vmatpush1.bf16.msra.mxu0 %v995
    %1051 = vmatprep.subr.bf16.mxu0 %v992
    %1052 = vmatpush1.bf16.msra.mxu0 %v991
    %1053 = vmatprep.subr.bf16.mxu0 %v988
    %1054 = vmatpush1.bf16.msra.mxu0 %v987
    %1055 = vmatprep.subr.bf16.mxu0 %v984
    %1056 = vmatpush1.bf16.msra.mxu0 %v983
    %1057 = vmatprep.subr.bf16.mxu0 %v980
    %1058 = vmatpush1.bf16.msra.mxu0 %v979
    %1059 = vmatprep.subr.bf16.mxu0 0
    %1060 = vmatpush2.bf16.msra.mxu0 0
    %1061 = vmatprep.subr.bf16.mxu0 0
    %1062 = vmatpush2.bf16.msra.mxu0 0
    %1063 = vmatprep.subr.bf16.mxu0 0
    %1064 = vmatpush2.bf16.msra.mxu0 0
    %1065 = vmatprep.subr.bf16.mxu0 0
    %1066 = vmatpush2.bf16.msra.mxu0 0
    %1067 = vmatprep.subr.bf16.mxu0 0
    %1068 = vmatpush2.bf16.msra.mxu0 0
    %1069 = vmatprep.subr.bf16.mxu0 0
    %1070 = vmatpush2.bf16.msra.mxu0 0
    %1071 = vmatprep.subr.bf16.mxu0 0
    %1072 = vmatpush2.bf16.msra.mxu0 0
    %1073 = vmatprep.subr.bf16.mxu0 0
    %1074 = vmatpush2.bf16.msra.mxu0 0
    %1075 = vmatprep.mubr.bf16.mxu0 0
    %1076 = vmatmul.mubr.bf16.gmra.mxu0 %v850
    %v1077 = vpop.f32.mrf.mxu0
    %v1078 = vadd.f32 0.0, %v1077
    %v1079 = vpop.f32.mrf.mxu0
    %v1080 = vadd.f32 0.0, %v1079
    %v1081 = vpop.f32.mrf.mxu0
    %v1082 = vpop.f32.mrf.mxu0
    %1083 = vdwg.mxu0
    %1084 = vmatprep.subr.bf16.mxu0 %v1010
    %1085 = vmatpush1.bf16.msra.mxu0 %v1009
    %1086 = vmatprep.subr.bf16.mxu0 %v1006
    %1087 = vmatpush1.bf16.msra.mxu0 %v1005
    %1088 = vmatprep.subr.bf16.mxu0 %v1002
    %1089 = vmatpush1.bf16.msra.mxu0 %v1001
    %1090 = vmatprep.subr.bf16.mxu0 %v998
    %1091 = vmatpush1.bf16.msra.mxu0 %v997
    %1092 = vmatprep.subr.bf16.mxu0 %v994
    %1093 = vmatpush1.bf16.msra.mxu0 %v993
    %1094 = vmatprep.subr.bf16.mxu0 %v990
    %1095 = vmatpush1.bf16.msra.mxu0 %v989
    %1096 = vmatprep.subr.bf16.mxu0 %v986
    %1097 = vmatpush1.bf16.msra.mxu0 %v985
    %1098 = vmatprep.subr.bf16.mxu0 %v982
    %1099 = vmatpush1.bf16.msra.mxu0 %v981
    %1100 = vmatprep.subr.bf16.mxu0 0
    %1101 = vmatpush2.bf16.msra.mxu0 0
    %1102 = vmatprep.subr.bf16.mxu0 0
    %1103 = vmatpush2.bf16.msra.mxu0 0
    %1104 = vmatprep.subr.bf16.mxu0 0
    %1105 = vmatpush2.bf16.msra.mxu0 0
    %1106 = vmatprep.subr.bf16.mxu0 0
    %1107 = vmatpush2.bf16.msra.mxu0 0
    %1108 = vmatprep.subr.bf16.mxu0 0
    %1109 = vmatpush2.bf16.msra.mxu0 0
    %1110 = vmatprep.subr.bf16.mxu0 0
    %1111 = vmatpush2.bf16.msra.mxu0 0
    %1112 = vmatprep.subr.bf16.mxu0 0
    %1113 = vmatpush2.bf16.msra.mxu0 0
    %1114 = vmatprep.subr.bf16.mxu0 0
    %1115 = vmatpush2.bf16.msra.mxu0 0
    %1116 = vmatprep.mubr.bf16.mxu0 0
    %1117 = vmatmul.mubr.bf16.gmra.mxu0 %v850
    %v1118 = vpop.f32.mrf.mxu0
    %v1119 = vadd.f32 0.0, %v1118
    %v1120 = vpop.f32.mrf.mxu0
    %v1121 = vadd.f32 0.0, %v1120
    %v1122 = vpop.f32.mrf.mxu0
    %v1123 = vpop.f32.mrf.mxu0
    %1124 = vdwg.mxu0
    %v1125 = vadd.f32 %v846, %v1078
    %v1126 = vadd.f32 %v847, %v1080
    %v1127 = vadd.f32 %v848, %v1119
    %v1128 = vadd.f32 %v849, %v1121
    %v1129 = vxor.u32 %v1125, 2147483648
    %v1130 = vxor.u32 %v1126, 2147483648
    %v1131 = vxor.u32 %v1127, 2147483648
    %v1132 = vmul.f32 %v1129, 1.442695
    %v1133 = vpow.pop %v1132
    %v1134 = vmul.f32 %v1130, 1.442695
    %v1135 = vpow.pop %v1134
    %v1136 = vmul.f32 %v1131, 1.442695
    %v1137 = vpow.pop %v1136
    %v1138 = vadd.f32 %v1133, 1.0
    %v1139 = vadd.f32 %v1135, 1.0
    %v1140 = vadd.f32 %v1137, 1.0
    %v1141 = vrcp.pop %v1138
    %v1142 = vmul.f32 1.0, %v1141
    %v1143 = vrcp.pop %v1139
    %v1144 = vmul.f32 1.0, %v1143
    %v1145 = vrcp.pop %v1140
    %v1146 = vmul.f32 1.0, %v1145
    %v1147 = vtanh.pop %v1128
    %v1148 = vmul.f32 %v1144, %v845
    %v1149 = vmul.f32 %v1142, %v1147
    %v1150 = vadd.f32 %v1148, %v1149
    %v1151 = vtanh.pop %v1150
    %v1152 = vmul.f32 %v1146, %v1151
    %s1153 = scalar_lea.vmem [#allocation2], 32
    %v1154 = vld [vmem:[%s1153] sm:$0xff]
    %v1155 = vld [vmem:[%s1153 + $0x8] sm:$0xff]
    %v1156 = vld [vmem:[%s1153 + $0x10] sm:$0xff]
    %v1157 = vld [vmem:[%s1153 + $0x18] sm:$0xff]
    %v1158 = vpack.c.bf16 %v1152, %v1152
    %1159 = vmatprep.subr.bf16.mxu0 %v1008
    %1160 = vmatpush1.bf16.msra.mxu0 %v1007
    %1161 = vmatprep.subr.bf16.mxu0 %v1004
    %1162 = vmatpush1.bf16.msra.mxu0 %v1003
    %1163 = vmatprep.subr.bf16.mxu0 %v1000
    %1164 = vmatpush1.bf16.msra.mxu0 %v999
    %1165 = vmatprep.subr.bf16.mxu0 %v996
    %1166 = vmatpush1.bf16.msra.mxu0 %v995
    %1167 = vmatprep.subr.bf16.mxu0 %v992
    %1168 = vmatpush1.bf16.msra.mxu0 %v991
    %1169 = vmatprep.subr.bf16.mxu0 %v988
    %1170 = vmatpush1.bf16.msra.mxu0 %v987
    %1171 = vmatprep.subr.bf16.mxu0 %v984
    %1172 = vmatpush1.bf16.msra.mxu0 %v983
    %1173 = vmatprep.subr.bf16.mxu0 %v980
    %1174 = vmatpush1.bf16.msra.mxu0 %v979
    %1175 = vmatprep.subr.bf16.mxu0 0
    %1176 = vmatpush2.bf16.msra.mxu0 0
    %1177 = vmatprep.subr.bf16.mxu0 0
    %1178 = vmatpush2.bf16.msra.mxu0 0
    %1179 = vmatprep.subr.bf16.mxu0 0
    %1180 = vmatpush2.bf16.msra.mxu0 0
    %1181 = vmatprep.subr.bf16.mxu0 0
    %1182 = vmatpush2.bf16.msra.mxu0 0
    %1183 = vmatprep.subr.bf16.mxu0 0
    %1184 = vmatpush2.bf16.msra.mxu0 0
    %1185 = vmatprep.subr.bf16.mxu0 0
    %1186 = vmatpush2.bf16.msra.mxu0 0
    %1187 = vmatprep.subr.bf16.mxu0 0
    %1188 = vmatpush2.bf16.msra.mxu0 0
    %1189 = vmatprep.subr.bf16.mxu0 0
    %1190 = vmatpush2.bf16.msra.mxu0 0
    %1191 = vmatprep.mubr.bf16.mxu0 0
    %1192 = vmatmul.mubr.bf16.gmra.mxu0 %v1158
    %v1193 = vpop.f32.mrf.mxu0
    %v1194 = vadd.f32 0.0, %v1193
    %v1195 = vpop.f32.mrf.mxu0
    %v1196 = vadd.f32 0.0, %v1195
    %v1197 = vpop.f32.mrf.mxu0
    %v1198 = vpop.f32.mrf.mxu0
    %1199 = vdwg.mxu0
    %1200 = vmatprep.subr.bf16.mxu0 %v1010
    %1201 = vmatpush1.bf16.msra.mxu0 %v1009
    %1202 = vmatprep.subr.bf16.mxu0 %v1006
    %1203 = vmatpush1.bf16.msra.mxu0 %v1005
    %1204 = vmatprep.subr.bf16.mxu0 %v1002
    %1205 = vmatpush1.bf16.msra.mxu0 %v1001
    %1206 = vmatprep.subr.bf16.mxu0 %v998
    %1207 = vmatpush1.bf16.msra.mxu0 %v997
    %1208 = vmatprep.subr.bf16.mxu0 %v994
    %1209 = vmatpush1.bf16.msra.mxu0 %v993
    %1210 = vmatprep.subr.bf16.mxu0 %v990
    %1211 = vmatpush1.bf16.msra.mxu0 %v989
    %1212 = vmatprep.subr.bf16.mxu0 %v986
    %1213 = vmatpush1.bf16.msra.mxu0 %v985
    %1214 = vmatprep.subr.bf16.mxu0 %v982
    %1215 = vmatpush1.bf16.msra.mxu0 %v981
    %1216 = vmatprep.subr.bf16.mxu0 0
    %1217 = vmatpush2.bf16.msra.mxu0 0
    %1218 = vmatprep.subr.bf16.mxu0 0
    %1219 = vmatpush2.bf16.msra.mxu0 0
    %1220 = vmatprep.subr.bf16.mxu0 0
    %1221 = vmatpush2.bf16.msra.mxu0 0
    %1222 = vmatprep.subr.bf16.mxu0 0
    %1223 = vmatpush2.bf16.msra.mxu0 0
    %1224 = vmatprep.subr.bf16.mxu0 0
    %1225 = vmatpush2.bf16.msra.mxu0 0
    %1226 = vmatprep.subr.bf16.mxu0 0
    %1227 = vmatpush2.bf16.msra.mxu0 0
    %1228 = vmatprep.subr.bf16.mxu0 0
    %1229 = vmatpush2.bf16.msra.mxu0 0
    %1230 = vmatprep.subr.bf16.mxu0 0
    %1231 = vmatpush2.bf16.msra.mxu0 0
    %1232 = vmatprep.mubr.bf16.mxu0 0
    %1233 = vmatmul.mubr.bf16.gmra.mxu0 %v1158
    %v1234 = vpop.f32.mrf.mxu0
    %v1235 = vadd.f32 0.0, %v1234
    %v1236 = vpop.f32.mrf.mxu0
    %v1237 = vadd.f32 0.0, %v1236
    %v1238 = vpop.f32.mrf.mxu0
    %v1239 = vpop.f32.mrf.mxu0
    %1240 = vdwg.mxu0
    %v1241 = vadd.f32 %v1154, %v1194
    %v1242 = vadd.f32 %v1155, %v1196
    %v1243 = vadd.f32 %v1156, %v1235
    %v1244 = vadd.f32 %v1157, %v1237
    %v1245 = vxor.u32 %v1241, 2147483648
    %v1246 = vxor.u32 %v1242, 2147483648
    %v1247 = vxor.u32 %v1243, 2147483648
    %v1248 = vmul.f32 %v1245, 1.442695
    %v1249 = vpow.pop %v1248
    %v1250 = vmul.f32 %v1246, 1.442695
    %v1251 = vpow.pop %v1250
    %v1252 = vmul.f32 %v1247, 1.442695
    %v1253 = vpow.pop %v1252
    %v1254 = vadd.f32 %v1249, 1.0
    %v1255 = vadd.f32 %v1251, 1.0
    %v1256 = vadd.f32 %v1253, 1.0
    %v1257 = vrcp.pop %v1254
    %v1258 = vmul.f32 1.0, %v1257
    %v1259 = vrcp.pop %v1255
    %v1260 = vmul.f32 1.0, %v1259
    %v1261 = vrcp.pop %v1256
    %v1262 = vmul.f32 1.0, %v1261
    %v1263 = vtanh.pop %v1244
    %v1264 = vmul.f32 %v1260, %v1150
    %v1265 = vmul.f32 %v1258, %v1263
    %v1266 = vadd.f32 %v1264, %v1265
    %v1267 = vtanh.pop %v1266
    %v1268 = vmul.f32 %v1262, %v1267
    %s1269 = scalar_lea.vmem [#allocation2], 64
    %v1270 = vld [vmem:[%s1269] sm:$0xff]
    %v1271 = vld [vmem:[%s1269 + $0x8] sm:$0xff]
    %v1272 = vld [vmem:[%s1269 + $0x10] sm:$0xff]
    %v1273 = vld [vmem:[%s1269 + $0x18] sm:$0xff]
    %v1274 = vpack.c.bf16 %v1268, %v1268
    %1275 = vmatprep.subr.bf16.mxu0 %v1008
    %1276 = vmatpush1.bf16.msra.mxu0 %v1007
    %1277 = vmatprep.subr.bf16.mxu0 %v1004
    %1278 = vmatpush1.bf16.msra.mxu0 %v1003
    %1279 = vmatprep.subr.bf16.mxu0 %v1000
    %1280 = vmatpush1.bf16.msra.mxu0 %v999
    %1281 = vmatprep.subr.bf16.mxu0 %v996
    %1282 = vmatpush1.bf16.msra.mxu0 %v995
    %1283 = vmatprep.subr.bf16.mxu0 %v992
    %1284 = vmatpush1.bf16.msra.mxu0 %v991
    %1285 = vmatprep.subr.bf16.mxu0 %v988
    %1286 = vmatpush1.bf16.msra.mxu0 %v987
    %1287 = vmatprep.subr.bf16.mxu0 %v984
    %1288 = vmatpush1.bf16.msra.mxu0 %v983
    %1289 = vmatprep.subr.bf16.mxu0 %v980
    %1290 = vmatpush1.bf16.msra.mxu0 %v979
    %1291 = vmatprep.subr.bf16.mxu0 0
    %1292 = vmatpush2.bf16.msra.mxu0 0
    %1293 = vmatprep.subr.bf16.mxu0 0
    %1294 = vmatpush2.bf16.msra.mxu0 0
    %1295 = vmatprep.subr.bf16.mxu0 0
    %1296 = vmatpush2.bf16.msra.mxu0 0
    %1297 = vmatprep.subr.bf16.mxu0 0
    %1298 = vmatpush2.bf16.msra.mxu0 0
    %1299 = vmatprep.subr.bf16.mxu0 0
    %1300 = vmatpush2.bf16.msra.mxu0 0
    %1301 = vmatprep.subr.bf16.mxu0 0
    %1302 = vmatpush2.bf16.msra.mxu0 0
    %1303 = vmatprep.subr.bf16.mxu0 0
    %1304 = vmatpush2.bf16.msra.mxu0 0
    %1305 = vmatprep.subr.bf16.mxu0 0
    %1306 = vmatpush2.bf16.msra.mxu0 0
    %1307 = vmatprep.mubr.bf16.mxu0 0
    %1308 = vmatmul.mubr.bf16.gmra.mxu0 %v1274
    %v1309 = vpop.f32.mrf.mxu0
    %v1310 = vadd.f32 0.0, %v1309
    %v1311 = vpop.f32.mrf.mxu0
    %v1312 = vadd.f32 0.0, %v1311
    %v1313 = vpop.f32.mrf.mxu0
    %v1314 = vpop.f32.mrf.mxu0
    %1315 = vdwg.mxu0
    %1316 = vmatprep.subr.bf16.mxu0 %v1010
    %1317 = vmatpush1.bf16.msra.mxu0 %v1009
    %1318 = vmatprep.subr.bf16.mxu0 %v1006
    %1319 = vmatpush1.bf16.msra.mxu0 %v1005
    %1320 = vmatprep.subr.bf16.mxu0 %v1002
    %1321 = vmatpush1.bf16.msra.mxu0 %v1001
    %1322 = vmatprep.subr.bf16.mxu0 %v998
    %1323 = vmatpush1.bf16.msra.mxu0 %v997
    %1324 = vmatprep.subr.bf16.mxu0 %v994
    %1325 = vmatpush1.bf16.msra.mxu0 %v993
    %1326 = vmatprep.subr.bf16.mxu0 %v990
    %1327 = vmatpush1.bf16.msra.mxu0 %v989
    %1328 = vmatprep.subr.bf16.mxu0 %v986
    %1329 = vmatpush1.bf16.msra.mxu0 %v985
    %1330 = vmatprep.subr.bf16.mxu0 %v982
    %1331 = vmatpush1.bf16.msra.mxu0 %v981
    %1332 = vmatprep.subr.bf16.mxu0 0
    %1333 = vmatpush2.bf16.msra.mxu0 0
    %1334 = vmatprep.subr.bf16.mxu0 0
    %1335 = vmatpush2.bf16.msra.mxu0 0
    %1336 = vmatprep.subr.bf16.mxu0 0
    %1337 = vmatpush2.bf16.msra.mxu0 0
    %1338 = vmatprep.subr.bf16.mxu0 0
    %1339 = vmatpush2.bf16.msra.mxu0 0
    %1340 = vmatprep.subr.bf16.mxu0 0
    %1341 = vmatpush2.bf16.msra.mxu0 0
    %1342 = vmatprep.subr.bf16.mxu0 0
    %1343 = vmatpush2.bf16.msra.mxu0 0
    %1344 = vmatprep.subr.bf16.mxu0 0
    %1345 = vmatpush2.bf16.msra.mxu0 0
    %1346 = vmatprep.subr.bf16.mxu0 0
    %1347 = vmatpush2.bf16.msra.mxu0 0
    %1348 = vmatprep.mubr.bf16.mxu0 0
    %1349 = vmatmul.mubr.bf16.gmra.mxu0 %v1274
    %v1350 = vpop.f32.mrf.mxu0
    %v1351 = vadd.f32 0.0, %v1350
    %v1352 = vpop.f32.mrf.mxu0
    %v1353 = vadd.f32 0.0, %v1352
    %v1354 = vpop.f32.mrf.mxu0
    %v1355 = vpop.f32.mrf.mxu0
    %1356 = vdwg.mxu0
    %v1357 = vadd.f32 %v1270, %v1310
    %v1358 = vadd.f32 %v1271, %v1312
    %v1359 = vadd.f32 %v1272, %v1351
    %v1360 = vadd.f32 %v1273, %v1353
    %v1361 = vxor.u32 %v1357, 2147483648
    %v1362 = vxor.u32 %v1358, 2147483648
    %v1363 = vxor.u32 %v1359, 2147483648
    %v1364 = vmul.f32 %v1361, 1.442695
    %v1365 = vpow.pop %v1364
    %v1366 = vmul.f32 %v1362, 1.442695
    %v1367 = vpow.pop %v1366
    %v1368 = vmul.f32 %v1363, 1.442695
    %v1369 = vpow.pop %v1368
    %v1370 = vadd.f32 %v1365, 1.0
    %v1371 = vadd.f32 %v1367, 1.0
    %v1372 = vadd.f32 %v1369, 1.0
    %v1373 = vrcp.pop %v1370
    %v1374 = vmul.f32 1.0, %v1373
    %v1375 = vrcp.pop %v1371
    %v1376 = vmul.f32 1.0, %v1375
    %v1377 = vrcp.pop %v1372
    %v1378 = vmul.f32 1.0, %v1377
    %v1379 = vtanh.pop %v1360
    %v1380 = vmul.f32 %v1376, %v1266
    %v1381 = vmul.f32 %v1374, %v1379
    %v1382 = vadd.f32 %v1380, %v1381
    %v1383 = vtanh.pop %v1382
    %v1384 = vmul.f32 %v1378, %v1383
    %s1385 = scalar_lea.vmem [#allocation2], 96
    %v1386 = vld [vmem:[%s1385] sm:$0xff]
    %v1387 = vld [vmem:[%s1385 + $0x8] sm:$0xff]
    %v1388 = vld [vmem:[%s1385 + $0x10] sm:$0xff]
    %v1389 = vld [vmem:[%s1385 + $0x18] sm:$0xff]
    %v1390 = vpack.c.bf16 %v1384, %v1384
    %1391 = vmatprep.subr.bf16.mxu0 %v1008
    %1392 = vmatpush1.bf16.msra.mxu0 %v1007
    %1393 = vmatprep.subr.bf16.mxu0 %v1004
    %1394 = vmatpush1.bf16.msra.mxu0 %v1003
    %1395 = vmatprep.subr.bf16.mxu0 %v1000
    %1396 = vmatpush1.bf16.msra.mxu0 %v999
    %1397 = vmatprep.subr.bf16.mxu0 %v996
    %1398 = vmatpush1.bf16.msra.mxu0 %v995
    %1399 = vmatprep.subr.bf16.mxu0 %v992
    %1400 = vmatpush1.bf16.msra.mxu0 %v991
    %1401 = vmatprep.subr.bf16.mxu0 %v988
    %1402 = vmatpush1.bf16.msra.mxu0 %v987
    %1403 = vmatprep.subr.bf16.mxu0 %v984
    %1404 = vmatpush1.bf16.msra.mxu0 %v983
    %1405 = vmatprep.subr.bf16.mxu0 %v980
    %1406 = vmatpush1.bf16.msra.mxu0 %v979
    %1407 = vmatprep.subr.bf16.mxu0 0
    %1408 = vmatpush2.bf16.msra.mxu0 0
    %1409 = vmatprep.subr.bf16.mxu0 0
    %1410 = vmatpush2.bf16.msra.mxu0 0
    %1411 = vmatprep.subr.bf16.mxu0 0
    %1412 = vmatpush2.bf16.msra.mxu0 0
    %1413 = vmatprep.subr.bf16.mxu0 0
    %1414 = vmatpush2.bf16.msra.mxu0 0
    %1415 = vmatprep.subr.bf16.mxu0 0
    %1416 = vmatpush2.bf16.msra.mxu0 0
    %1417 = vmatprep.subr.bf16.mxu0 0
    %1418 = vmatpush2.bf16.msra.mxu0 0
    %1419 = vmatprep.subr.bf16.mxu0 0
    %1420 = vmatpush2.bf16.msra.mxu0 0
    %1421 = vmatprep.subr.bf16.mxu0 0
    %1422 = vmatpush2.bf16.msra.mxu0 0
    %1423 = vmatprep.mubr.bf16.mxu0 0
    %1424 = vmatmul.mubr.bf16.gmra.mxu0 %v1390
    %v1425 = vpop.f32.mrf.mxu0
    %v1426 = vadd.f32 0.0, %v1425
    %v1427 = vpop.f32.mrf.mxu0
    %v1428 = vadd.f32 0.0, %v1427
    %v1429 = vpop.f32.mrf.mxu0
    %v1430 = vpop.f32.mrf.mxu0
    %1431 = vdwg.mxu0
    %1432 = vmatprep.subr.bf16.mxu0 %v1010
    %1433 = vmatpush1.bf16.msra.mxu0 %v1009
    %1434 = vmatprep.subr.bf16.mxu0 %v1006
    %1435 = vmatpush1.bf16.msra.mxu0 %v1005
    %1436 = vmatprep.subr.bf16.mxu0 %v1002
    %1437 = vmatpush1.bf16.msra.mxu0 %v1001
    %1438 = vmatprep.subr.bf16.mxu0 %v998
    %1439 = vmatpush1.bf16.msra.mxu0 %v997
    %1440 = vmatprep.subr.bf16.mxu0 %v994
    %1441 = vmatpush1.bf16.msra.mxu0 %v993
    %1442 = vmatprep.subr.bf16.mxu0 %v990
    %1443 = vmatpush1.bf16.msra.mxu0 %v989
    %1444 = vmatprep.subr.bf16.mxu0 %v986
    %1445 = vmatpush1.bf16.msra.mxu0 %v985
    %1446 = vmatprep.subr.bf16.mxu0 %v982
    %1447 = vmatpush1.bf16.msra.mxu0 %v981
    %1448 = vmatprep.subr.bf16.mxu0 0
    %1449 = vmatpush2.bf16.msra.mxu0 0
    %1450 = vmatprep.subr.bf16.mxu0 0
    %1451 = vmatpush2.bf16.msra.mxu0 0
    %1452 = vmatprep.subr.bf16.mxu0 0
    %1453 = vmatpush2.bf16.msra.mxu0 0
    %1454 = vmatprep.subr.bf16.mxu0 0
    %1455 = vmatpush2.bf16.msra.mxu0 0
    %1456 = vmatprep.subr.bf16.mxu0 0
    %1457 = vmatpush2.bf16.msra.mxu0 0
    %1458 = vmatprep.subr.bf16.mxu0 0
    %1459 = vmatpush2.bf16.msra.mxu0 0
    %1460 = vmatprep.subr.bf16.mxu0 0
    %1461 = vmatpush2.bf16.msra.mxu0 0
    %1462 = vmatprep.subr.bf16.mxu0 0
    %1463 = vmatpush2.bf16.msra.mxu0 0
    %1464 = vmatprep.mubr.bf16.mxu0 0
    %1465 = vmatmul.mubr.bf16.gmra.mxu0 %v1390
    %v1466 = vpop.f32.mrf.mxu0
    %v1467 = vadd.f32 0.0, %v1466
    %v1468 = vpop.f32.mrf.mxu0
    %v1469 = vadd.f32 0.0, %v1468
    %v1470 = vpop.f32.mrf.mxu0
    %v1471 = vpop.f32.mrf.mxu0
    %1472 = vdwg.mxu0
    %v1473 = vadd.f32 %v1386, %v1426
    %v1474 = vadd.f32 %v1387, %v1428
    %v1475 = vadd.f32 %v1388, %v1467
    %v1476 = vadd.f32 %v1389, %v1469
    %v1477 = vxor.u32 %v1473, 2147483648
    %v1478 = vxor.u32 %v1474, 2147483648
    %v1479 = vxor.u32 %v1475, 2147483648
    %v1480 = vmul.f32 %v1477, 1.442695
    %v1481 = vpow.pop %v1480
    %v1482 = vmul.f32 %v1478, 1.442695
    %v1483 = vpow.pop %v1482
    %v1484 = vmul.f32 %v1479, 1.442695
    %v1485 = vpow.pop %v1484
    %v1486 = vadd.f32 %v1481, 1.0
    %v1487 = vadd.f32 %v1483, 1.0
    %v1488 = vadd.f32 %v1485, 1.0
    %v1489 = vrcp.pop %v1486
    %v1490 = vmul.f32 1.0, %v1489
    %v1491 = vrcp.pop %v1487
    %v1492 = vmul.f32 1.0, %v1491
    %v1493 = vrcp.pop %v1488
    %v1494 = vmul.f32 1.0, %v1493
    %v1495 = vtanh.pop %v1476
    %v1496 = vmul.f32 %v1492, %v1382
    %v1497 = vmul.f32 %v1490, %v1495
    %v1498 = vadd.f32 %v1496, %v1497
    %v1499 = vtanh.pop %v1498
    %v1500 = vmul.f32 %v1494, %v1499
    %s1501 = scalar_lea.vmem [#allocation2], 128
    %v1502 = vld [vmem:[%s1501] sm:$0xff]
    %v1503 = vld [vmem:[%s1501 + $0x8] sm:$0xff]
    %v1504 = vld [vmem:[%s1501 + $0x10] sm:$0xff]
    %v1505 = vld [vmem:[%s1501 + $0x18] sm:$0xff]
    %v1506 = vpack.c.bf16 %v1500, %v1500
    %1507 = vmatprep.subr.bf16.mxu0 %v1008
    %1508 = vmatpush1.bf16.msra.mxu0 %v1007
    %1509 = vmatprep.subr.bf16.mxu0 %v1004
    %1510 = vmatpush1.bf16.msra.mxu0 %v1003
    %1511 = vmatprep.subr.bf16.mxu0 %v1000
    %1512 = vmatpush1.bf16.msra.mxu0 %v999
    %1513 = vmatprep.subr.bf16.mxu0 %v996
    %1514 = vmatpush1.bf16.msra.mxu0 %v995
    %1515 = vmatprep.subr.bf16.mxu0 %v992
    %1516 = vmatpush1.bf16.msra.mxu0 %v991
    %1517 = vmatprep.subr.bf16.mxu0 %v988
    %1518 = vmatpush1.bf16.msra.mxu0 %v987
    %1519 = vmatprep.subr.bf16.mxu0 %v984
    %1520 = vmatpush1.bf16.msra.mxu0 %v983
    %1521 = vmatprep.subr.bf16.mxu0 %v980
    %1522 = vmatpush1.bf16.msra.mxu0 %v979
    %1523 = vmatprep.subr.bf16.mxu0 0
    %1524 = vmatpush2.bf16.msra.mxu0 0
    %1525 = vmatprep.subr.bf16.mxu0 0
    %1526 = vmatpush2.bf16.msra.mxu0 0
    %1527 = vmatprep.subr.bf16.mxu0 0
    %1528 = vmatpush2.bf16.msra.mxu0 0
    %1529 = vmatprep.subr.bf16.mxu0 0
    %1530 = vmatpush2.bf16.msra.mxu0 0
    %1531 = vmatprep.subr.bf16.mxu0 0
    %1532 = vmatpush2.bf16.msra.mxu0 0
    %1533 = vmatprep.subr.bf16.mxu0 0
    %1534 = vmatpush2.bf16.msra.mxu0 0
    %1535 = vmatprep.subr.bf16.mxu0 0
    %1536 = vmatpush2.bf16.msra.mxu0 0
    %1537 = vmatprep.subr.bf16.mxu0 0
    %1538 = vmatpush2.bf16.msra.mxu0 0
    %1539 = vmatprep.mubr.bf16.mxu0 0
    %1540 = vmatmul.mubr.bf16.gmra.mxu0 %v1506
    %v1541 = vpop.f32.mrf.mxu0
    %v1542 = vadd.f32 0.0, %v1541
    %v1543 = vpop.f32.mrf.mxu0
    %v1544 = vadd.f32 0.0, %v1543
    %v1545 = vpop.f32.mrf.mxu0
    %v1546 = vpop.f32.mrf.mxu0
    %1547 = vdwg.mxu0
    %1548 = vmatprep.subr.bf16.mxu0 %v1010
    %1549 = vmatpush1.bf16.msra.mxu0 %v1009
    %1550 = vmatprep.subr.bf16.mxu0 %v1006
    %1551 = vmatpush1.bf16.msra.mxu0 %v1005
    %1552 = vmatprep.subr.bf16.mxu0 %v1002
    %1553 = vmatpush1.bf16.msra.mxu0 %v1001
    %1554 = vmatprep.subr.bf16.mxu0 %v998
    %1555 = vmatpush1.bf16.msra.mxu0 %v997
    %1556 = vmatprep.subr.bf16.mxu0 %v994
    %1557 = vmatpush1.bf16.msra.mxu0 %v993
    %1558 = vmatprep.subr.bf16.mxu0 %v990
    %1559 = vmatpush1.bf16.msra.mxu0 %v989
    %1560 = vmatprep.subr.bf16.mxu0 %v986
    %1561 = vmatpush1.bf16.msra.mxu0 %v985
    %1562 = vmatprep.subr.bf16.mxu0 %v982
    %1563 = vmatpush1.bf16.msra.mxu0 %v981
    %1564 = vmatprep.subr.bf16.mxu0 0
    %1565 = vmatpush2.bf16.msra.mxu0 0
    %1566 = vmatprep.subr.bf16.mxu0 0
    %1567 = vmatpush2.bf16.msra.mxu0 0
    %1568 = vmatprep.subr.bf16.mxu0 0
    %1569 = vmatpush2.bf16.msra.mxu0 0
    %1570 = vmatprep.subr.bf16.mxu0 0
    %1571 = vmatpush2.bf16.msra.mxu0 0
    %1572 = vmatprep.subr.bf16.mxu0 0
    %1573 = vmatpush2.bf16.msra.mxu0 0
    %1574 = vmatprep.subr.bf16.mxu0 0
    %1575 = vmatpush2.bf16.msra.mxu0 0
    %1576 = vmatprep.subr.bf16.mxu0 0
    %1577 = vmatpush2.bf16.msra.mxu0 0
    %1578 = vmatprep.subr.bf16.mxu0 0
    %1579 = vmatpush2.bf16.msra.mxu0 0
    %1580 = vmatprep.mubr.bf16.mxu0 0
    %1581 = vmatmul.mubr.bf16.gmra.mxu0 %v1506
    %v1582 = vpop.f32.mrf.mxu0
    %v1583 = vadd.f32 0.0, %v1582
    %v1584 = vpop.f32.mrf.mxu0
    %v1585 = vadd.f32 0.0, %v1584
    %v1586 = vpop.f32.mrf.mxu0
    %v1587 = vpop.f32.mrf.mxu0
    %1588 = vdwg.mxu0
    %v1589 = vadd.f32 %v1502, %v1542
    %v1590 = vadd.f32 %v1503, %v1544
    %v1591 = vadd.f32 %v1504, %v1583
    %v1592 = vadd.f32 %v1505, %v1585
    %v1593 = vxor.u32 %v1589, 2147483648
    %v1594 = vxor.u32 %v1590, 2147483648
    %v1595 = vxor.u32 %v1591, 2147483648
    %v1596 = vmul.f32 %v1593, 1.442695
    %v1597 = vpow.pop %v1596
    %v1598 = vmul.f32 %v1594, 1.442695
    %v1599 = vpow.pop %v1598
    %v1600 = vmul.f32 %v1595, 1.442695
    %v1601 = vpow.pop %v1600
    %v1602 = vadd.f32 %v1597, 1.0
    %v1603 = vadd.f32 %v1599, 1.0
    %v1604 = vadd.f32 %v1601, 1.0
    %v1605 = vrcp.pop %v1602
    %v1606 = vmul.f32 1.0, %v1605
    %v1607 = vrcp.pop %v1603
    %v1608 = vmul.f32 1.0, %v1607
    %v1609 = vrcp.pop %v1604
    %v1610 = vmul.f32 1.0, %v1609
    %v1611 = vtanh.pop %v1592
    %v1612 = vmul.f32 %v1608, %v1498
    %v1613 = vmul.f32 %v1606, %v1611
    %v1614 = vadd.f32 %v1612, %v1613
    %v1615 = vtanh.pop %v1614
    %v1616 = vmul.f32 %v1610, %v1615
    %s1617 = scalar_lea.vmem [#allocation2], 160
    %v1618 = vld [vmem:[%s1617] sm:$0xff]
    %v1619 = vld [vmem:[%s1617 + $0x8] sm:$0xff]
    %v1620 = vld [vmem:[%s1617 + $0x10] sm:$0xff]
    %v1621 = vld [vmem:[%s1617 + $0x18] sm:$0xff]
    %v1622 = vpack.c.bf16 %v1616, %v1616
    %1623 = vmatprep.subr.bf16.mxu0 %v1008
    %1624 = vmatpush1.bf16.msra.mxu0 %v1007
    %1625 = vmatprep.subr.bf16.mxu0 %v1004
    %1626 = vmatpush1.bf16.msra.mxu0 %v1003
    %1627 = vmatprep.subr.bf16.mxu0 %v1000
    %1628 = vmatpush1.bf16.msra.mxu0 %v999
    %1629 = vmatprep.subr.bf16.mxu0 %v996
    %1630 = vmatpush1.bf16.msra.mxu0 %v995
    %1631 = vmatprep.subr.bf16.mxu0 %v992
    %1632 = vmatpush1.bf16.msra.mxu0 %v991
    %1633 = vmatprep.subr.bf16.mxu0 %v988
    %1634 = vmatpush1.bf16.msra.mxu0 %v987
    %1635 = vmatprep.subr.bf16.mxu0 %v984
    %1636 = vmatpush1.bf16.msra.mxu0 %v983
    %1637 = vmatprep.subr.bf16.mxu0 %v980
    %1638 = vmatpush1.bf16.msra.mxu0 %v979
    %1639 = vmatprep.subr.bf16.mxu0 0
    %1640 = vmatpush2.bf16.msra.mxu0 0
    %1641 = vmatprep.subr.bf16.mxu0 0
    %1642 = vmatpush2.bf16.msra.mxu0 0
    %1643 = vmatprep.subr.bf16.mxu0 0
    %1644 = vmatpush2.bf16.msra.mxu0 0
    %1645 = vmatprep.subr.bf16.mxu0 0
    %1646 = vmatpush2.bf16.msra.mxu0 0
    %1647 = vmatprep.subr.bf16.mxu0 0
    %1648 = vmatpush2.bf16.msra.mxu0 0
    %1649 = vmatprep.subr.bf16.mxu0 0
    %1650 = vmatpush2.bf16.msra.mxu0 0
    %1651 = vmatprep.subr.bf16.mxu0 0
    %1652 = vmatpush2.bf16.msra.mxu0 0
    %1653 = vmatprep.subr.bf16.mxu0 0
    %1654 = vmatpush2.bf16.msra.mxu0 0
    %1655 = vmatprep.mubr.bf16.mxu0 0
    %1656 = vmatmul.mubr.bf16.gmra.mxu0 %v1622
    %v1657 = vpop.f32.mrf.mxu0
    %v1658 = vadd.f32 0.0, %v1657
    %v1659 = vpop.f32.mrf.mxu0
    %v1660 = vadd.f32 0.0, %v1659
    %v1661 = vpop.f32.mrf.mxu0
    %v1662 = vpop.f32.mrf.mxu0
    %1663 = vdwg.mxu0
    %1664 = vmatprep.subr.bf16.mxu0 %v1010
    %1665 = vmatpush1.bf16.msra.mxu0 %v1009
    %1666 = vmatprep.subr.bf16.mxu0 %v1006
    %1667 = vmatpush1.bf16.msra.mxu0 %v1005
    %1668 = vmatprep.subr.bf16.mxu0 %v1002
    %1669 = vmatpush1.bf16.msra.mxu0 %v1001
    %1670 = vmatprep.subr.bf16.mxu0 %v998
    %1671 = vmatpush1.bf16.msra.mxu0 %v997
    %1672 = vmatprep.subr.bf16.mxu0 %v994
    %1673 = vmatpush1.bf16.msra.mxu0 %v993
    %1674 = vmatprep.subr.bf16.mxu0 %v990
    %1675 = vmatpush1.bf16.msra.mxu0 %v989
    %1676 = vmatprep.subr.bf16.mxu0 %v986
    %1677 = vmatpush1.bf16.msra.mxu0 %v985
    %1678 = vmatprep.subr.bf16.mxu0 %v982
    %1679 = vmatpush1.bf16.msra.mxu0 %v981
    %1680 = vmatprep.subr.bf16.mxu0 0
    %1681 = vmatpush2.bf16.msra.mxu0 0
    %1682 = vmatprep.subr.bf16.mxu0 0
    %1683 = vmatpush2.bf16.msra.mxu0 0
    %1684 = vmatprep.subr.bf16.mxu0 0
    %1685 = vmatpush2.bf16.msra.mxu0 0
    %1686 = vmatprep.subr.bf16.mxu0 0
    %1687 = vmatpush2.bf16.msra.mxu0 0
    %1688 = vmatprep.subr.bf16.mxu0 0
    %1689 = vmatpush2.bf16.msra.mxu0 0
    %1690 = vmatprep.subr.bf16.mxu0 0
    %1691 = vmatpush2.bf16.msra.mxu0 0
    %1692 = vmatprep.subr.bf16.mxu0 0
    %1693 = vmatpush2.bf16.msra.mxu0 0
    %1694 = vmatprep.subr.bf16.mxu0 0
    %1695 = vmatpush2.bf16.msra.mxu0 0
    %1696 = vmatprep.mubr.bf16.mxu0 0
    %1697 = vmatmul.mubr.bf16.gmra.mxu0 %v1622
    %v1698 = vpop.f32.mrf.mxu0
    %v1699 = vadd.f32 0.0, %v1698
    %v1700 = vpop.f32.mrf.mxu0
    %v1701 = vadd.f32 0.0, %v1700
    %v1702 = vpop.f32.mrf.mxu0
    %v1703 = vpop.f32.mrf.mxu0
    %1704 = vdwg.mxu0
    %v1705 = vadd.f32 %v1618, %v1658
    %v1706 = vadd.f32 %v1619, %v1660
    %v1707 = vadd.f32 %v1620, %v1699
    %v1708 = vadd.f32 %v1621, %v1701
    %v1709 = vxor.u32 %v1705, 2147483648
    %v1710 = vxor.u32 %v1706, 2147483648
    %v1711 = vxor.u32 %v1707, 2147483648
    %v1712 = vmul.f32 %v1709, 1.442695
    %v1713 = vpow.pop %v1712
    %v1714 = vmul.f32 %v1710, 1.442695
    %v1715 = vpow.pop %v1714
    %v1716 = vmul.f32 %v1711, 1.442695
    %v1717 = vpow.pop %v1716
    %v1718 = vadd.f32 %v1713, 1.0
    %v1719 = vadd.f32 %v1715, 1.0
    %v1720 = vadd.f32 %v1717, 1.0
    %v1721 = vrcp.pop %v1718
    %v1722 = vmul.f32 1.0, %v1721
    %v1723 = vrcp.pop %v1719
    %v1724 = vmul.f32 1.0, %v1723
    %v1725 = vrcp.pop %v1720
    %v1726 = vmul.f32 1.0, %v1725
    %v1727 = vtanh.pop %v1708
    %v1728 = vmul.f32 %v1724, %v1614
    %v1729 = vmul.f32 %v1722, %v1727
    %v1730 = vadd.f32 %v1728, %v1729
    %v1731 = vtanh.pop %v1730
    %v1732 = vmul.f32 %v1726, %v1731
    %s1733 = scalar_lea.vmem [#allocation2], 192
    %v1734 = vld [vmem:[%s1733] sm:$0xff]
    %v1735 = vld [vmem:[%s1733 + $0x8] sm:$0xff]
    %v1736 = vld [vmem:[%s1733 + $0x10] sm:$0xff]
    %v1737 = vld [vmem:[%s1733 + $0x18] sm:$0xff]
    %v1738 = vpack.c.bf16 %v1732, %v1732
    %1739 = vmatprep.subr.bf16.mxu0 %v1008
    %1740 = vmatpush1.bf16.msra.mxu0 %v1007
    %1741 = vmatprep.subr.bf16.mxu0 %v1004
    %1742 = vmatpush1.bf16.msra.mxu0 %v1003
    %1743 = vmatprep.subr.bf16.mxu0 %v1000
    %1744 = vmatpush1.bf16.msra.mxu0 %v999
    %1745 = vmatprep.subr.bf16.mxu0 %v996
    %1746 = vmatpush1.bf16.msra.mxu0 %v995
    %1747 = vmatprep.subr.bf16.mxu0 %v992
    %1748 = vmatpush1.bf16.msra.mxu0 %v991
    %1749 = vmatprep.subr.bf16.mxu0 %v988
    %1750 = vmatpush1.bf16.msra.mxu0 %v987
    %1751 = vmatprep.subr.bf16.mxu0 %v984
    %1752 = vmatpush1.bf16.msra.mxu0 %v983
    %1753 = vmatprep.subr.bf16.mxu0 %v980
    %1754 = vmatpush1.bf16.msra.mxu0 %v979
    %1755 = vmatprep.subr.bf16.mxu0 0
    %1756 = vmatpush2.bf16.msra.mxu0 0
    %1757 = vmatprep.subr.bf16.mxu0 0
    %1758 = vmatpush2.bf16.msra.mxu0 0
    %1759 = vmatprep.subr.bf16.mxu0 0
    %1760 = vmatpush2.bf16.msra.mxu0 0
    %1761 = vmatprep.subr.bf16.mxu0 0
    %1762 = vmatpush2.bf16.msra.mxu0 0
    %1763 = vmatprep.subr.bf16.mxu0 0
    %1764 = vmatpush2.bf16.msra.mxu0 0
    %1765 = vmatprep.subr.bf16.mxu0 0
    %1766 = vmatpush2.bf16.msra.mxu0 0
    %1767 = vmatprep.subr.bf16.mxu0 0
    %1768 = vmatpush2.bf16.msra.mxu0 0
    %1769 = vmatprep.subr.bf16.mxu0 0
    %1770 = vmatpush2.bf16.msra.mxu0 0
    %1771 = vmatprep.mubr.bf16.mxu0 0
    %1772 = vmatmul.mubr.bf16.gmra.mxu0 %v1738
    %v1773 = vpop.f32.mrf.mxu0
    %v1774 = vadd.f32 0.0, %v1773
    %v1775 = vpop.f32.mrf.mxu0
    %v1776 = vadd.f32 0.0, %v1775
    %v1777 = vpop.f32.mrf.mxu0
    %v1778 = vpop.f32.mrf.mxu0
    %1779 = vdwg.mxu0
    %1780 = vmatprep.subr.bf16.mxu0 %v1010
    %1781 = vmatpush1.bf16.msra.mxu0 %v1009
    %1782 = vmatprep.subr.bf16.mxu0 %v1006
    %1783 = vmatpush1.bf16.msra.mxu0 %v1005
    %1784 = vmatprep.subr.bf16.mxu0 %v1002
    %1785 = vmatpush1.bf16.msra.mxu0 %v1001
    %1786 = vmatprep.subr.bf16.mxu0 %v998
    %1787 = vmatpush1.bf16.msra.mxu0 %v997
    %1788 = vmatprep.subr.bf16.mxu0 %v994
    %1789 = vmatpush1.bf16.msra.mxu0 %v993
    %1790 = vmatprep.subr.bf16.mxu0 %v990
    %1791 = vmatpush1.bf16.msra.mxu0 %v989
    %1792 = vmatprep.subr.bf16.mxu0 %v986
    %1793 = vmatpush1.bf16.msra.mxu0 %v985
    %1794 = vmatprep.subr.bf16.mxu0 %v982
    %1795 = vmatpush1.bf16.msra.mxu0 %v981
    %1796 = vmatprep.subr.bf16.mxu0 0
    %1797 = vmatpush2.bf16.msra.mxu0 0
    %1798 = vmatprep.subr.bf16.mxu0 0
    %1799 = vmatpush2.bf16.msra.mxu0 0
    %1800 = vmatprep.subr.bf16.mxu0 0
    %1801 = vmatpush2.bf16.msra.mxu0 0
    %1802 = vmatprep.subr.bf16.mxu0 0
    %1803 = vmatpush2.bf16.msra.mxu0 0
    %1804 = vmatprep.subr.bf16.mxu0 0
    %1805 = vmatpush2.bf16.msra.mxu0 0
    %1806 = vmatprep.subr.bf16.mxu0 0
    %1807 = vmatpush2.bf16.msra.mxu0 0
    %1808 = vmatprep.subr.bf16.mxu0 0
    %1809 = vmatpush2.bf16.msra.mxu0 0
    %1810 = vmatprep.subr.bf16.mxu0 0
    %1811 = vmatpush2.bf16.msra.mxu0 0
    %1812 = vmatprep.mubr.bf16.mxu0 0
    %1813 = vmatmul.mubr.bf16.gmra.mxu0 %v1738
    %v1814 = vpop.f32.mrf.mxu0
    %v1815 = vadd.f32 0.0, %v1814
    %v1816 = vpop.f32.mrf.mxu0
    %v1817 = vadd.f32 0.0, %v1816
    %v1818 = vpop.f32.mrf.mxu0
    %v1819 = vpop.f32.mrf.mxu0
    %1820 = vdwg.mxu0
    %v1821 = vadd.f32 %v1734, %v1774
    %v1822 = vadd.f32 %v1735, %v1776
    %v1823 = vadd.f32 %v1736, %v1815
    %v1824 = vadd.f32 %v1737, %v1817
    %v1825 = vxor.u32 %v1821, 2147483648
    %v1826 = vxor.u32 %v1822, 2147483648
    %v1827 = vxor.u32 %v1823, 2147483648
    %v1828 = vmul.f32 %v1825, 1.442695
    %v1829 = vpow.pop %v1828
    %v1830 = vmul.f32 %v1826, 1.442695
    %v1831 = vpow.pop %v1830
    %v1832 = vmul.f32 %v1827, 1.442695
    %v1833 = vpow.pop %v1832
    %v1834 = vadd.f32 %v1829, 1.0
    %v1835 = vadd.f32 %v1831, 1.0
    %v1836 = vadd.f32 %v1833, 1.0
    %v1837 = vrcp.pop %v1834
    %v1838 = vmul.f32 1.0, %v1837
    %v1839 = vrcp.pop %v1835
    %v1840 = vmul.f32 1.0, %v1839
    %v1841 = vrcp.pop %v1836
    %v1842 = vmul.f32 1.0, %v1841
    %v1843 = vtanh.pop %v1824
    %v1844 = vmul.f32 %v1840, %v1730
    %v1845 = vmul.f32 %v1838, %v1843
    %v1846 = vadd.f32 %v1844, %v1845
    %v1847 = vtanh.pop %v1846
    %v1848 = vmul.f32 %v1842, %v1847
    %s1849 = scalar_lea.vmem [#allocation2], 224
    %v1850 = vld [vmem:[%s1849] sm:$0xff]
    %v1851 = vld [vmem:[%s1849 + $0x8] sm:$0xff]
    %v1852 = vld [vmem:[%s1849 + $0x10] sm:$0xff]
    %v1853 = vld [vmem:[%s1849 + $0x18] sm:$0xff]
    %v1854 = vpack.c.bf16 %v1848, %v1848
    %1855 = vmatprep.subr.bf16.mxu0 %v1008
    %1856 = vmatpush1.bf16.msra.mxu0 %v1007
    %1857 = vmatprep.subr.bf16.mxu0 %v1004
    %1858 = vmatpush1.bf16.msra.mxu0 %v1003
    %1859 = vmatprep.subr.bf16.mxu0 %v1000
    %1860 = vmatpush1.bf16.msra.mxu0 %v999
    %1861 = vmatprep.subr.bf16.mxu0 %v996
    %1862 = vmatpush1.bf16.msra.mxu0 %v995
    %1863 = vmatprep.subr.bf16.mxu0 %v992
    %1864 = vmatpush1.bf16.msra.mxu0 %v991
    %1865 = vmatprep.subr.bf16.mxu0 %v988
    %1866 = vmatpush1.bf16.msra.mxu0 %v987
    %1867 = vmatprep.subr.bf16.mxu0 %v984
    %1868 = vmatpush1.bf16.msra.mxu0 %v983
    %1869 = vmatprep.subr.bf16.mxu0 %v980
    %1870 = vmatpush1.bf16.msra.mxu0 %v979
    %1871 = vmatprep.subr.bf16.mxu0 0
    %1872 = vmatpush2.bf16.msra.mxu0 0
    %1873 = vmatprep.subr.bf16.mxu0 0
    %1874 = vmatpush2.bf16.msra.mxu0 0
    %1875 = vmatprep.subr.bf16.mxu0 0
    %1876 = vmatpush2.bf16.msra.mxu0 0
    %1877 = vmatprep.subr.bf16.mxu0 0
    %1878 = vmatpush2.bf16.msra.mxu0 0
    %1879 = vmatprep.subr.bf16.mxu0 0
    %1880 = vmatpush2.bf16.msra.mxu0 0
    %1881 = vmatprep.subr.bf16.mxu0 0
    %1882 = vmatpush2.bf16.msra.mxu0 0
    %1883 = vmatprep.subr.bf16.mxu0 0
    %1884 = vmatpush2.bf16.msra.mxu0 0
    %1885 = vmatprep.subr.bf16.mxu0 0
    %1886 = vmatpush2.bf16.msra.mxu0 0
    %1887 = vmatprep.mubr.bf16.mxu0 0
    %1888 = vmatmul.mubr.bf16.gmra.mxu0 %v1854
    %v1889 = vpop.f32.mrf.mxu0
    %v1890 = vadd.f32 0.0, %v1889
    %v1891 = vpop.f32.mrf.mxu0
    %v1892 = vadd.f32 0.0, %v1891
    %v1893 = vpop.f32.mrf.mxu0
    %v1894 = vpop.f32.mrf.mxu0
    %1895 = vdwg.mxu0
    %1896 = vmatprep.subr.bf16.mxu0 %v1010
    %1897 = vmatpush1.bf16.msra.mxu0 %v1009
    %1898 = vmatprep.subr.bf16.mxu0 %v1006
    %1899 = vmatpush1.bf16.msra.mxu0 %v1005
    %1900 = vmatprep.subr.bf16.mxu0 %v1002
    %1901 = vmatpush1.bf16.msra.mxu0 %v1001
    %1902 = vmatprep.subr.bf16.mxu0 %v998
    %1903 = vmatpush1.bf16.msra.mxu0 %v997
    %1904 = vmatprep.subr.bf16.mxu0 %v994
    %1905 = vmatpush1.bf16.msra.mxu0 %v993
    %1906 = vmatprep.subr.bf16.mxu0 %v990
    %1907 = vmatpush1.bf16.msra.mxu0 %v989
    %1908 = vmatprep.subr.bf16.mxu0 %v986
    %1909 = vmatpush1.bf16.msra.mxu0 %v985
    %1910 = vmatprep.subr.bf16.mxu0 %v982
    %1911 = vmatpush1.bf16.msra.mxu0 %v981
    %1912 = vmatprep.subr.bf16.mxu0 0
    %1913 = vmatpush2.bf16.msra.mxu0 0
    %1914 = vmatprep.subr.bf16.mxu0 0
    %1915 = vmatpush2.bf16.msra.mxu0 0
    %1916 = vmatprep.subr.bf16.mxu0 0
    %1917 = vmatpush2.bf16.msra.mxu0 0
    %1918 = vmatprep.subr.bf16.mxu0 0
    %1919 = vmatpush2.bf16.msra.mxu0 0
    %1920 = vmatprep.subr.bf16.mxu0 0
    %1921 = vmatpush2.bf16.msra.mxu0 0
    %1922 = vmatprep.subr.bf16.mxu0 0
    %1923 = vmatpush2.bf16.msra.mxu0 0
    %1924 = vmatprep.subr.bf16.mxu0 0
    %1925 = vmatpush2.bf16.msra.mxu0 0
    %1926 = vmatprep.subr.bf16.mxu0 0
    %1927 = vmatpush2.bf16.msra.mxu0 0
    %1928 = vmatprep.mubr.bf16.mxu0 0
    %1929 = vmatmul.mubr.bf16.gmra.mxu0 %v1854
    %v1930 = vpop.f32.mrf.mxu0
    %v1931 = vadd.f32 0.0, %v1930
    %v1932 = vpop.f32.mrf.mxu0
    %v1933 = vadd.f32 0.0, %v1932
    %v1934 = vpop.f32.mrf.mxu0
    %v1935 = vpop.f32.mrf.mxu0
    %1936 = vdwg.mxu0
    %v1937 = vadd.f32 %v1850, %v1890
    %v1938 = vadd.f32 %v1851, %v1892
    %v1939 = vadd.f32 %v1852, %v1931
    %v1940 = vadd.f32 %v1853, %v1933
    %v1941 = vxor.u32 %v1937, 2147483648
    %v1942 = vxor.u32 %v1938, 2147483648
    %v1943 = vxor.u32 %v1939, 2147483648
    %v1944 = vmul.f32 %v1941, 1.442695
    %v1945 = vpow.pop %v1944
    %v1946 = vmul.f32 %v1942, 1.442695
    %v1947 = vpow.pop %v1946
    %v1948 = vmul.f32 %v1943, 1.442695
    %v1949 = vpow.pop %v1948
    %v1950 = vadd.f32 %v1945, 1.0
    %v1951 = vadd.f32 %v1947, 1.0
    %v1952 = vadd.f32 %v1949, 1.0
    %v1953 = vrcp.pop %v1950
    %v1954 = vmul.f32 1.0, %v1953
    %v1955 = vrcp.pop %v1951
    %v1956 = vmul.f32 1.0, %v1955
    %v1957 = vrcp.pop %v1952
    %v1958 = vmul.f32 1.0, %v1957
    %v1959 = vtanh.pop %v1940
    %v1960 = vmul.f32 %v1956, %v1846
    %v1961 = vmul.f32 %v1954, %v1959
    %v1962 = vadd.f32 %v1960, %v1961
    %v1963 = vtanh.pop %v1962
    %v1964 = vmul.f32 %v1958, %v1963
    %v1965 = vpack.c.bf16 %v1964, %v1964
    %v1966 = vld [vmem:[#allocation8] sm:$0xff]
    %v1967 = vld [vmem:[#allocation8 + $0x8] sm:$0xff]
    %v1968 = vld [vmem:[#allocation8 + $0x10] sm:$0xff]
    %v1969 = vld [vmem:[#allocation8 + $0x18] sm:$0xff]
    %v1970 = vld [vmem:[#allocation8 + $0x20] sm:$0xff]
    %v1971 = vld [vmem:[#allocation8 + $0x28] sm:$0xff]
    %v1972 = vld [vmem:[#allocation8 + $0x30] sm:$0xff]
    %v1973 = vld [vmem:[#allocation8 + $0x38] sm:$0xff]
    %v1974 = vld [vmem:[#allocation8 + $0x40] sm:$0xff]
    %v1975 = vld [vmem:[#allocation8 + $0x48] sm:$0xff]
    %v1976 = vld [vmem:[#allocation8 + $0x50] sm:$0xff]
    %v1977 = vld [vmem:[#allocation8 + $0x58] sm:$0xff]
    %v1978 = vld [vmem:[#allocation8 + $0x60] sm:$0xff]
    %v1979 = vld [vmem:[#allocation8 + $0x68] sm:$0xff]
    %v1980 = vld [vmem:[#allocation8 + $0x70] sm:$0xff]
    %v1981 = vld [vmem:[#allocation8 + $0x78] sm:$0xff]
    %v1982 = vld [vmem:[%s9] sm:$0x3]
    %v1984 = vlaneseq
    %v1985 = vshrl.u32 %v1984, 7
    %v1986 = vsub.s32 0, %v1985
    %v1987 = vrot.slane %v1982, %v1986
    %v1988 = vlaneseq
    %v1989 = vshrl.u32 %v1988, 7
    %v1990 = vsub.s32 1, %v1989
    %v1991 = vrot.slane %v1982, %v1990
    %v2010 = vunpack.c.l.b16 %v1966
    %v2011 = vunpack.c.h.b16 %v1966
    %v2012 = vunpack.c.l.b16 %v1967
    %v2013 = vunpack.c.h.b16 %v1967
    %v2014 = vunpack.c.l.b16 %v1968
    %v2015 = vunpack.c.h.b16 %v1968
    %v2016 = vunpack.c.l.b16 %v1969
    %v2017 = vunpack.c.h.b16 %v1969
    %v2018 = vunpack.c.l.b16 %v1970
    %v2019 = vunpack.c.h.b16 %v1970
    %v2020 = vunpack.c.l.b16 %v1971
    %v2021 = vunpack.c.h.b16 %v1971
    %v2022 = vunpack.c.l.b16 %v1972
    %v2023 = vunpack.c.h.b16 %v1972
    %v2024 = vunpack.c.l.b16 %v1973
    %v2025 = vunpack.c.h.b16 %v1973
    %v2026 = vunpack.c.l.b16 %v1974
    %v2027 = vunpack.c.h.b16 %v1974
    %v2028 = vunpack.c.l.b16 %v1975
    %v2029 = vunpack.c.h.b16 %v1975
    %v2030 = vunpack.c.l.b16 %v1976
    %v2031 = vunpack.c.h.b16 %v1976
    %v2032 = vunpack.c.l.b16 %v1977
    %v2033 = vunpack.c.h.b16 %v1977
    %v2034 = vunpack.c.l.b16 %v1978
    %v2035 = vunpack.c.h.b16 %v1978
    %v2036 = vunpack.c.l.b16 %v1979
    %v2037 = vunpack.c.h.b16 %v1979
    %v2038 = vunpack.c.l.b16 %v1980
    %v2039 = vunpack.c.h.b16 %v1980
    %v2040 = vunpack.c.l.b16 %v1981
    %v2041 = vunpack.c.h.b16 %v1981
    %v2042 = vpack.c.b16 %v2012, %v2010
    %v2043 = vpack.c.b16 %v2013, %v2011
    %v2044 = vpack.c.b16 %v2016, %v2014
    %v2045 = vpack.c.b16 %v2017, %v2015
    %v2046 = vpack.c.b16 %v2020, %v2018
    %v2047 = vpack.c.b16 %v2021, %v2019
    %v2048 = vpack.c.b16 %v2024, %v2022
    %v2049 = vpack.c.b16 %v2025, %v2023
    %v2050 = vpack.c.b16 %v2028, %v2026
    %v2051 = vpack.c.b16 %v2029, %v2027
    %v2052 = vpack.c.b16 %v2032, %v2030
    %v2053 = vpack.c.b16 %v2033, %v2031
    %v2054 = vpack.c.b16 %v2036, %v2034
    %v2055 = vpack.c.b16 %v2037, %v2035
    %v2056 = vpack.c.b16 %v2040, %v2038
    %v2057 = vpack.c.b16 %v2041, %v2039
    %2074 = vmatprep.subr.bf16.mxu0 %v2057
    %2075 = vmatpush1.bf16.msra.mxu0 %v2056
    %2076 = vmatprep.subr.bf16.mxu0 %v2055
    %2077 = vmatpush1.bf16.msra.mxu0 %v2054
    %2078 = vmatprep.subr.bf16.mxu0 %v2053
    %2079 = vmatpush1.bf16.msra.mxu0 %v2052
    %2080 = vmatprep.subr.bf16.mxu0 %v2051
    %2081 = vmatpush1.bf16.msra.mxu0 %v2050
    %2082 = vmatprep.subr.bf16.mxu0 %v2049
    %2083 = vmatpush1.bf16.msra.mxu0 %v2048
    %2084 = vmatprep.subr.bf16.mxu0 %v2047
    %2085 = vmatpush1.bf16.msra.mxu0 %v2046
    %2086 = vmatprep.subr.bf16.mxu0 %v2045
    %2087 = vmatpush1.bf16.msra.mxu0 %v2044
    %2088 = vmatprep.subr.bf16.mxu0 %v2043
    %2089 = vmatpush1.bf16.msra.mxu0 %v2042
    %2090 = vmatprep.subr.bf16.mxu0 0
    %2091 = vmatpush2.bf16.msra.mxu0 0
    %2092 = vmatprep.subr.bf16.mxu0 0
    %2093 = vmatpush2.bf16.msra.mxu0 0
    %2094 = vmatprep.subr.bf16.mxu0 0
    %2095 = vmatpush2.bf16.msra.mxu0 0
    %2096 = vmatprep.subr.bf16.mxu0 0
    %2097 = vmatpush2.bf16.msra.mxu0 0
    %2098 = vmatprep.subr.bf16.mxu0 0
    %2099 = vmatpush2.bf16.msra.mxu0 0
    %2100 = vmatprep.subr.bf16.mxu0 0
    %2101 = vmatpush2.bf16.msra.mxu0 0
    %2102 = vmatprep.subr.bf16.mxu0 0
    %2103 = vmatpush2.bf16.msra.mxu0 0
    %2104 = vmatprep.subr.bf16.mxu0 0
    %2105 = vmatpush2.bf16.msra.mxu0 0
    %2106 = vmatprep.mubr.bf16.mxu0 0
    %2107 = vmatmul.mubr.bf16.gmra.mxu0 %v1965
    %v2108 = vpop.f32.mrf.mxu0
    %v2109 = vadd.f32 %v1987, %v2108
    %v2110 = vpop.f32.mrf.mxu0
    %v2111 = vadd.f32 %v1991, %v2110
    %v2112 = vpop.f32.mrf.mxu0
    %v2113 = vpop.f32.mrf.mxu0
    %2114 = vdwg.mxu0
    %v2115 = vmax.f32 %v2109, 0.0
    %v2116 = vmax.f32 %v2111, 0.0
    %v2117 = vpack.c.bf16 %v2115, %v2115
    %v2118 = vpack.c.bf16 %v2116, %v2116
    %v2119 = vld [vmem:[#allocation9] sm:$0xf]
    %v2120 = vld [vmem:[#allocation9 + $0x4] sm:$0xf]
    %v2121 = vld [vmem:[#allocation9 + $0x8] sm:$0xf]
    %v2122 = vld [vmem:[#allocation9 + $0xc] sm:$0xf]
    %v2123 = vld [vmem:[#allocation9 + $0x10] sm:$0xf]
    %v2124 = vld [vmem:[#allocation9 + $0x14] sm:$0xf]
    %v2125 = vld [vmem:[#allocation9 + $0x18] sm:$0xf]
    %v2126 = vld [vmem:[#allocation9 + $0x1c] sm:$0xf]
    %v2127 = vld [vmem:[#allocation9 + $0x20] sm:$0xf]
    %v2128 = vld [vmem:[#allocation9 + $0x24] sm:$0xf]
    %v2129 = vld [vmem:[#allocation9 + $0x28] sm:$0xf]
    %v2130 = vld [vmem:[#allocation9 + $0x2c] sm:$0xf]
    %v2131 = vld [vmem:[#allocation9 + $0x30] sm:$0xf]
    %v2132 = vld [vmem:[#allocation9 + $0x34] sm:$0xf]
    %v2133 = vld [vmem:[#allocation9 + $0x38] sm:$0xf]
    %v2134 = vld [vmem:[#allocation9 + $0x3c] sm:$0xf]
    %v2135 = vld [vmem:[#allocation9 + $0x40] sm:$0xf]
    %v2136 = vld [vmem:[#allocation9 + $0x44] sm:$0xf]
    %v2137 = vld [vmem:[#allocation9 + $0x48] sm:$0xf]
    %v2138 = vld [vmem:[#allocation9 + $0x4c] sm:$0xf]
    %v2139 = vld [vmem:[#allocation9 + $0x50] sm:$0xf]
    %v2140 = vld [vmem:[#allocation9 + $0x54] sm:$0xf]
    %v2141 = vld [vmem:[#allocation9 + $0x58] sm:$0xf]
    %v2142 = vld [vmem:[#allocation9 + $0x5c] sm:$0xf]
    %v2143 = vld [vmem:[#allocation9 + $0x60] sm:$0xf]
    %v2144 = vld [vmem:[#allocation9 + $0x64] sm:$0xf]
    %v2145 = vld [vmem:[#allocation9 + $0x68] sm:$0xf]
    %v2146 = vld [vmem:[#allocation9 + $0x6c] sm:$0xf]
    %v2147 = vld [vmem:[#allocation9 + $0x70] sm:$0xf]
    %v2148 = vld [vmem:[#allocation9 + $0x74] sm:$0xf]
    %v2149 = vld [vmem:[#allocation9 + $0x78] sm:$0xf]
    %v2150 = vld [vmem:[#allocation9 + $0x7c] sm:$0xf]
    %v2151 = vld [vmem:[%s11] sm:$0x1]
    %v2153 = vlaneseq
    %v2154 = vshrl.u32 %v2153, 7
    %v2155 = vsub.s32 0, %v2154
    %v2156 = vrot.slane %v2151, %v2155
    %v2190 = vunpack.c.l.b16 %v2119
    %v2191 = vunpack.c.l.b16 %v2120
    %v2192 = vunpack.c.l.b16 %v2121
    %v2193 = vunpack.c.l.b16 %v2122
    %v2194 = vunpack.c.l.b16 %v2123
    %v2195 = vunpack.c.l.b16 %v2124
    %v2196 = vunpack.c.l.b16 %v2125
    %v2197 = vunpack.c.l.b16 %v2126
    %v2198 = vunpack.c.l.b16 %v2127
    %v2199 = vunpack.c.l.b16 %v2128
    %v2200 = vunpack.c.l.b16 %v2129
    %v2201 = vunpack.c.l.b16 %v2130
    %v2202 = vunpack.c.l.b16 %v2131
    %v2203 = vunpack.c.l.b16 %v2132
    %v2204 = vunpack.c.l.b16 %v2133
    %v2205 = vunpack.c.l.b16 %v2134
    %v2206 = vunpack.c.l.b16 %v2135
    %v2207 = vunpack.c.l.b16 %v2136
    %v2208 = vunpack.c.l.b16 %v2137
    %v2209 = vunpack.c.l.b16 %v2138
    %v2210 = vunpack.c.l.b16 %v2139
    %v2211 = vunpack.c.l.b16 %v2140
    %v2212 = vunpack.c.l.b16 %v2141
    %v2213 = vunpack.c.l.b16 %v2142
    %v2214 = vunpack.c.l.b16 %v2143
    %v2215 = vunpack.c.l.b16 %v2144
    %v2216 = vunpack.c.l.b16 %v2145
    %v2217 = vunpack.c.l.b16 %v2146
    %v2218 = vunpack.c.l.b16 %v2147
    %v2219 = vunpack.c.l.b16 %v2148
    %v2220 = vunpack.c.l.b16 %v2149
    %v2221 = vunpack.c.l.b16 %v2150
    %v2222 = vpack.c.b16 %v2191, %v2190
    %v2223 = vpack.c.b16 %v2193, %v2192
    %v2224 = vpack.c.b16 %v2195, %v2194
    %v2225 = vpack.c.b16 %v2197, %v2196
    %v2226 = vpack.c.b16 %v2199, %v2198
    %v2227 = vpack.c.b16 %v2201, %v2200
    %v2228 = vpack.c.b16 %v2203, %v2202
    %v2229 = vpack.c.b16 %v2205, %v2204
    %v2230 = vpack.c.b16 %v2207, %v2206
    %v2231 = vpack.c.b16 %v2209, %v2208
    %v2232 = vpack.c.b16 %v2211, %v2210
    %v2233 = vpack.c.b16 %v2213, %v2212
    %v2234 = vpack.c.b16 %v2215, %v2214
    %v2235 = vpack.c.b16 %v2217, %v2216
    %v2236 = vpack.c.b16 %v2219, %v2218
    %v2237 = vpack.c.b16 %v2221, %v2220
    %2254 = vmatprep.subr.bf16.mxu0 0
    %2255 = vmatpush1.bf16.msra.mxu0 %v2229
    %2256 = vmatprep.subr.bf16.mxu0 0
    %2257 = vmatpush1.bf16.msra.mxu0 %v2228
    %2258 = vmatprep.subr.bf16.mxu0 0
    %2259 = vmatpush1.bf16.msra.mxu0 %v2227
    %2260 = vmatprep.subr.bf16.mxu0 0
    %2261 = vmatpush1.bf16.msra.mxu0 %v2226
    %2262 = vmatprep.subr.bf16.mxu0 0
    %2263 = vmatpush1.bf16.msra.mxu0 %v2225
    %2264 = vmatprep.subr.bf16.mxu0 0
    %2265 = vmatpush1.bf16.msra.mxu0 %v2224
    %2266 = vmatprep.subr.bf16.mxu0 0
    %2267 = vmatpush1.bf16.msra.mxu0 %v2223
    %2268 = vmatprep.subr.bf16.mxu0 0
    %2269 = vmatpush1.bf16.msra.mxu0 %v2222
    %2270 = vmatprep.subr.bf16.mxu0 0
    %2271 = vmatpush2.bf16.msra.mxu0 %v2237
    %2272 = vmatprep.subr.bf16.mxu0 0
    %2273 = vmatpush2.bf16.msra.mxu0 %v2236
    %2274 = vmatprep.subr.bf16.mxu0 0
    %2275 = vmatpush2.bf16.msra.mxu0 %v2235
    %2276 = vmatprep.subr.bf16.mxu0 0
    %2277 = vmatpush2.bf16.msra.mxu0 %v2234
    %2278 = vmatprep.subr.bf16.mxu0 0
    %2279 = vmatpush2.bf16.msra.mxu0 %v2233
    %2280 = vmatprep.subr.bf16.mxu0 0
    %2281 = vmatpush2.bf16.msra.mxu0 %v2232
    %2282 = vmatprep.subr.bf16.mxu0 0
    %2283 = vmatpush2.bf16.msra.mxu0 %v2231
    %2284 = vmatprep.subr.bf16.mxu0 0
    %2285 = vmatpush2.bf16.msra.mxu0 %v2230
    %2286 = vmatprep.mubr.bf16.mxu0 %v2118
    %2287 = vmatmul.mubr.bf16.gmra.mxu0 %v2117
    %v2288 = vpop.f32.mrf.mxu0
    %v2289 = vadd.f32 %v2156, %v2288
    %v2290 = vpop.f32.mrf.mxu0
    %v2291 = vpop.f32.mrf.mxu0
    %v2292 = vpop.f32.mrf.mxu0
    %2293 = vdwg.mxu0
    %v2294 = vtanh.pop %v2289
    %2295 = vst [vmem:[#allocation11] sm:$0xff] %v2294
    %2296 = vst [vmem:[#allocation12] sm:$0xff] %v1964
    %2297 = vst [vmem:[#allocation14] sm:$0xff] %v1962
    // Predicated region
    $region66: #{tpu_custom_call.1} parent=1 // pred_check
      _
    $region67: #{tpu_custom_call.1} parent=1 // pred_check_branch
      %2299 = sbr.rel (0) target = $region69
    $region68: #{tpu_custom_call.1} parent=1 // pred_region
      %s2301 = ssub.s32 128, 128
      %2302 = vsyncadd [#allocation5], %s2301
      %s2304 = sshll.u32 [#allocation11], 4
      %s2305 = int_to_ptr.vmem [resolvable:$true] %s2304
      %2307 = dma.vmem_to_hbm [thread:$0]  %s2305, 128, %s12, [#allocation5]
    $region69: #{tpu_custom_call.1} parent=1 // pred_fallthru
      _
    // Predicated region
    $region70: #{tpu_custom_call.1} parent=1 // pred_check
      _
    $region71: #{tpu_custom_call.1} parent=1 // pred_check_branch
      %2309 = sbr.rel (0) target = $region73
    $region72: #{tpu_custom_call.1} parent=1 // pred_region
      %s2311 = ssub.s32 128, 128
      %2312 = vsyncadd [#allocation13], %s2311
      %s2314 = sshll.u32 [#allocation12], 4
      %s2315 = int_to_ptr.vmem [resolvable:$true] %s2314
      %2317 = dma.vmem_to_hbm [thread:$0]  %s2315, 128, %s13, [#allocation13]
    $region73: #{tpu_custom_call.1} parent=1 // pred_fallthru
      _
    // Predicated region
    $region74: #{tpu_custom_call.1} parent=1 // pred_check
      _
    $region75: #{tpu_custom_call.1} parent=1 // pred_check_branch
      %2319 = sbr.rel (0) target = $region77
    $region76: #{tpu_custom_call.1} parent=1 // pred_region
      %s2321 = ssub.s32 128, 128
      %2322 = vsyncadd [#allocation13], %s2321
      %s2324 = sshll.u32 [#allocation14], 4
      %s2325 = int_to_ptr.vmem [resolvable:$true] %s2324
      %2327 = dma.vmem_to_hbm [thread:$0]  %s2325, 128, %s14, [#allocation13]
    $region77: #{tpu_custom_call.1} parent=1 // pred_fallthru
      _
    // Predicated region
    $region78: #{tpu_custom_call.1} parent=1 // pred_check
      _
    $region79: #{tpu_custom_call.1} parent=1 // pred_check_branch
      %2329 = sbr.rel (0) target = $region81
    $region80: #{tpu_custom_call.1} parent=1 // pred_region
      %2330 = dma.done [#allocation5], 128
    $region81: #{tpu_custom_call.1} parent=1 // pred_fallthru
      _
    // Predicated region
    $region82: #{tpu_custom_call.1} parent=1 // pred_check
      _
    $region83: #{tpu_custom_call.1} parent=1 // pred_check_branch
      %2332 = sbr.rel (0) target = $region85
    $region84: #{tpu_custom_call.1} parent=1 // pred_region
      %2333 = dma.done [#allocation13], 128
    $region85: #{tpu_custom_call.1} parent=1 // pred_fallthru
      _
    // Predicated region
    $region86: #{tpu_custom_call.1} parent=1 // pred_check
      _
    $region87: #{tpu_custom_call.1} parent=1 // pred_check_branch
      %2335 = sbr.rel (0) target = $region89
    $region88: #{tpu_custom_call.1} parent=1 // pred_region
      %2336 = dma.done [#allocation13], 128
    $region89: #{tpu_custom_call.1} parent=1 // pred_fallthru
      _
    %2337 = vsyncpa [#allocation4], 1
    %2338 = vsyncpa [#allocation7], 1
    %2339 = vsyncpa [#allocation10], 1
    %2340 = vsyncpa [#allocation5], 1
    %2341 = vsyncpa [#allocation13], 1

</llo_original>
